<compile_context>
chip_gen: v5e
topology: v5e:2x2
jax: 0.10.0
libtpu: 0.0.40
codegen_flags: <defaults>
</compile_context>

<pallas_src>
import functools

import jax
import jax.numpy as jnp
from jax.experimental import pallas as pl
from jax.experimental.pallas import tpu as pltpu


def _gumbel_from_hash(flat_idx, seed):
    """~i.i.d. Gumbel(0,1) noise from an integer hash (murmur3 fmix32).

    Uses only elementwise integer/float ops (xor / shift / mul / log), so it
    lowers on the TPU VPU/EUP and also runs in interpret mode — no hardware
    PRNG primitives.
    """
    x = flat_idx.astype(jnp.uint32) + seed.astype(jnp.uint32) * jnp.uint32(0x9E3779B9)
    x = x ^ (x >> 16)
    x = x * jnp.uint32(0x85EBCA6B)
    x = x ^ (x >> 13)
    x = x * jnp.uint32(0xC2B2AE35)
    x = x ^ (x >> 16)
    # Top 24 bits -> uniform in [0, 1) (go through int32 so the int->float
    # convert is a plain signed convert).
    u = (x >> 8).astype(jnp.int32).astype(jnp.float32) * jnp.float32(1.0 / (1 << 24))
    u = jnp.maximum(u, jnp.float32(1e-12))
    return -jnp.log(-jnp.log(u))


def _gumbel_attn_kernel(seed_ref,
                        q_ref, v_ref,
                        wq_ref, bq_ref, wv_ref, bv_ref,
                        wg_ref, bg_ref, wo_ref, bo_ref,
                        out_ref, sel_ref,
                        v_scratch, attn_scratch,
                        *, num_heads, head_dim, seq_len, add_noise):
    b = pl.program_id(0)
    qt = pl.program_id(1)
    tq = q_ref.shape[1]
    S = seq_len
    H = num_heads

    # V projection of the whole sequence: computed once per batch (q-tile 0) and
    # kept VMEM-resident (scratch persists across grid iterations).
    @pl.when(qt == 0)
    def _project_v():
        v = jnp.dot(v_ref[0], wv_ref[...],
                    preferred_element_type=jnp.float32) + bv_ref[...]
        v_scratch[...] = v.astype(jnp.bfloat16)

    # Q projection for this query tile: one full-width (tq, E) @ (E, E) matmul.
    q = jnp.dot(q_ref[0], wq_ref[...],
                preferred_element_type=jnp.float32) + bq_ref[...]
    q = q.astype(jnp.bfloat16)

    col = jax.lax.broadcasted_iota(jnp.int32, (tq, S), 1)
    if add_noise:
        row_g = jax.lax.broadcasted_iota(jnp.int32, (tq, S), 0) + qt * tq
        seed = seed_ref[0]

    for h in range(H):
        lo = h * head_dim
        hi = lo + head_dim

        # Gumbel-predictor logits for this head: (tq, hd) @ (hd, S).
        y = jnp.dot(q[:, lo:hi], wg_ref[...],
                    preferred_element_type=jnp.float32) + bg_ref[...]
        if add_noise:
            # Unique counter per (batch, head, query-row, key-col) -> hash noise.
            flat = ((b * H + h) * S + row_g) * S + col
            y = y + _gumbel_from_hash(flat, seed)
        # NOTE: gumbel_softmax's `/ tau` is dropped — tau > 0 never changes the
        # argmax, and the hard forward value is exactly one_hot(argmax).

        # one_hot(argmax) with first-max tie-break (matches torch/jnp argmax).
        ymax = jnp.max(y, axis=-1, keepdims=True)
        first = jnp.min(jnp.where(y == ymax, col, S), axis=-1, keepdims=True)
        sel_ref[0, :, h:h + 1] = first

        # The masked softmax of a one-hot mask is the mask itself, so the
        # attention output is a row selection of V_h: one_hot @ V_h (the
        # QK^T scores / scaling / softmax path has no effect on the forward).
        mask = (col == first).astype(jnp.bfloat16)
        attn_scratch[:, lo:hi] = jnp.dot(mask, v_scratch[:, lo:hi],
                                         preferred_element_type=jnp.float32)

    # Single fused output projection over the concatenated heads.
    out = jnp.dot(attn_scratch[...].astype(jnp.bfloat16), wo_ref[...],
                  preferred_element_type=jnp.float32) + bo_ref[...]
    out_ref[0] = out.astype(out_ref.dtype)


def gumbel_sparse_attention(query, key, value, params, *, num_heads, tau=0.1,
                            seed=0, add_noise=True, block_q=None):
    """Forward pass of GumbelSparseAttention.

    Returns (output, selected_key_index): output is (B, S, E) float32 and
    selected_key_index is (B, S, H) int32 (the sampled sparse attention pattern).

    `key` and `tau` are accepted for API parity with the PyTorch module but do
    not influence the forward value: the hard gumbel mask is an exact one-hot,
    so softmax(masked scores) == mask independently of K and of any tau > 0.
    """
    del key   # forward output is independent of the key tensor (see docstring)
    del tau   # tau > 0 never changes the hard (argmax) mask

    B, S, E = query.shape
    H = num_heads
    hd = E // H
    assert hd * H == E, "embed_dim must be divisible by num_heads"

    if block_q is None:
        block_q = S if S <= 256 else 256
    assert S % block_q == 0
    n_qt = S // block_q

    wq, bq, wk, bk, wv, bv, wo, bo, wg, bg = params  # torch Linear layout (out,in)
    del wk, bk  # K projection is dead in the forward pass (see docstring)

    # NOTE: in production these transposes/casts are done once at parameter-load
    # time (cached), not on every call.
    bf16 = jnp.bfloat16
    wq_t = wq.T.astype(bf16)                       # (E, E): y = x @ W^T
    wv_t = wv.T.astype(bf16)
    wo_t = wo.T.astype(bf16)
    wg_t = wg.T.astype(bf16)                       # (hd, S)
    bq_r = bq.reshape(1, E).astype(jnp.float32)
    bv_r = bv.reshape(1, E).astype(jnp.float32)
    bo_r = bo.reshape(1, E).astype(jnp.float32)
    bg_r = bg.reshape(1, S).astype(jnp.float32)

    q_bf = query.astype(bf16)
    v_bf = value.astype(bf16)
    seed_arr = jnp.asarray([seed], dtype=jnp.int32)

    kernel = functools.partial(_gumbel_attn_kernel, num_heads=H, head_dim=hd,
                               seq_len=S, add_noise=add_noise)

    grid = (B, n_qt)
    in_specs = [
        pl.BlockSpec((1, block_q, E), lambda b, t, s: (b, t, 0)),  # query tile
        pl.BlockSpec((1, S, E), lambda b, t, s: (b, 0, 0)),        # value (full S)
        pl.BlockSpec((E, E), lambda b, t, s: (0, 0)),              # Wq^T  (resident)
        pl.BlockSpec((1, E), lambda b, t, s: (0, 0)),              # bq
        pl.BlockSpec((E, E), lambda b, t, s: (0, 0)),              # Wv^T  (resident)
        pl.BlockSpec((1, E), lambda b, t, s: (0, 0)),              # bv
        pl.BlockSpec((hd, S), lambda b, t, s: (0, 0)),             # Wg^T  (resident)
        pl.BlockSpec((1, S), lambda b, t, s: (0, 0)),              # bg
        pl.BlockSpec((E, E), lambda b, t, s: (0, 0)),              # Wo^T  (resident)
        pl.BlockSpec((1, E), lambda b, t, s: (0, 0)),              # bo
    ]
    out_specs = (
        pl.BlockSpec((1, block_q, E), lambda b, t, s: (b, t, 0)),  # output tile
        pl.BlockSpec((1, block_q, H), lambda b, t, s: (b, t, 0)),  # selected idx
    )
    out_shape = (
        jax.ShapeDtypeStruct((B, S, E), jnp.float32),
        jax.ShapeDtypeStruct((B, S, H), jnp.int32),
    )

    out, sel = pl.pallas_call(
        kernel,
        out_shape=out_shape,
        grid_spec=pltpu.PrefetchScalarGridSpec(
            num_scalar_prefetch=1,
            grid=grid,
            in_specs=in_specs,
            out_specs=out_specs,
            scratch_shapes=[
                pltpu.VMEM((S, E), bf16),                # projected V (per batch)
                pltpu.VMEM((block_q, E), jnp.float32),   # concatenated head outputs
            ]),
        compiler_params=pltpu.CompilerParams(
            dimension_semantics=("parallel", "arbitrary"),
            vmem_limit_bytes=48 * 1024 * 1024,
        ),
    )(seed_arr, q_bf, v_bf,
      wq_t, bq_r, wv_t, bv_r, wg_t, bg_r, wo_t, bo_r)
    return out, sel


# ----------------------------- verification helpers ---------------------------

def _output_from_indices(value, params, sel, *, num_heads):
    """Pure-JAX forward given the selected key index per (batch, query, head).

    Because the hard gumbel-softmax mask is an exact one-hot per query row, the
    masked softmax collapses back to that one-hot, so the module output is fully
    determined by the selection: out = concat_h(one_hot(sel_h) @ V_h) @ Wo^T + bo.
    """
    B, S, E = value.shape
    H = num_heads
    hd = E // H
    wq, bq, wk, bk, wv, bv, wo, bo, wg, bg = params
    v = (value @ wv.T + bv).reshape(B, S, H, hd).transpose(0, 2, 1, 3)   # (B,H,S,hd)
    idx = jnp.transpose(sel, (0, 2, 1))                                   # (B,H,S)
    onehot = jax.nn.one_hot(idx, S, dtype=jnp.float32)                    # (B,H,S,S)
    attn = jnp.einsum("bhqk,bhkd->bhqd", onehot, v)
    attn = attn.transpose(0, 2, 1, 3).reshape(B, S, E)
    return attn @ wo.T + bo


def _reference_selection_no_noise(query, params, *, num_heads):
    """Reference argmax of the gumbel-predictor logits (noise disabled)."""
    B, S, E = query.shape
    H = num_heads
    hd = E // H
    wq, bq, wk, bk, wv, bv, wo, bo, wg, bg = params
    q = (query @ wq.T + bq).reshape(B, S, H, hd).transpose(0, 2, 1, 3)    # (B,H,S,hd)
    logits = q @ wg.T + bg                                                # (B,H,S,S)
    idx = jnp.argmax(logits, axis=-1)                                     # (B,H,S)
    top2 = jax.lax.top_k(logits, 2)[0]
    gap = top2[..., 0] - top2[..., 1]                                     # (B,H,S)
    return idx, gap


def _init_linear(key, out_dim, in_dim):
    kw, kb = jax.random.split(key)
    bound = 1.0 / (in_dim ** 0.5)
    w = jax.random.uniform(kw, (out_dim, in_dim), jnp.float32, -bound, bound)
    b = jax.random.uniform(kb, (out_dim,), jnp.float32, -bound, bound)
    return w, b


if __name__ == "__main__":
    B, S, E, H = 2, 8, 32, 4
    hd = E // H
    tau = 0.1

    root = jax.random.PRNGKey(0)
    keys = jax.random.split(root, 8)

    wq, bq = _init_linear(keys[0], E, E)
    wk, bk = _init_linear(keys[1], E, E)
    wv, bv = _init_linear(keys[2], E, E)
    wo, bo = _init_linear(keys[3], E, E)
    wg, bg = _init_linear(keys[4], S, hd)   # gumbel_predictor: Linear(head_dim, seq_len)
    params = (wq, bq, wk, bk, wv, bv, wo, bo, wg, bg)

    query = jax.random.normal(keys[5], (B, S, E), jnp.float32)
    key_in = jax.random.normal(keys[6], (B, S, E), jnp.float32)
    value = jax.random.normal(keys[7], (B, S, E), jnp.float32)

    # --- Check 1: deterministic path (Gumbel noise disabled) vs pure-JAX ref ---
    out0, sel0 = gumbel_sparse_attention(query, key_in, value, params,
                                         num_heads=H, tau=tau, add_noise=False)
    out0 = jax.block_until_ready(out0)
    ref_idx, gap = _reference_selection_no_noise(query, params, num_heads=H)
    sel0_bhs = jnp.transpose(sel0, (0, 2, 1))
    # bf16 MXU operands can flip near-ties; only demand an exact index match when
    # the top-2 logit gap is comfortably above bf16 rounding error.
    if not bool(jnp.all((sel0_bhs == ref_idx) | (gap < 1e-1))):
        raise AssertionError("argmax selection mismatch on the no-noise path")
    ref_out0 = _output_from_indices(value, params, sel0, num_heads=H)
    if not jnp.allclose(out0, ref_out0, atol=5e-2, rtol=5e-2):
        raise AssertionError("output mismatch on the no-noise path")

    # --- Check 2: stochastic path (in-kernel Gumbel noise) consistency ---
    out, sel = gumbel_sparse_attention(query, key_in, value, params,
                                       num_heads=H, tau=tau, seed=42)
    out = jax.block_until_ready(out)
    if not bool(jnp.all((sel >= 0) & (sel < S))):
        raise AssertionError("selected key index out of range")
    ref_out = _output_from_indices(value, params, sel, num_heads=H)
    if not jnp.allclose(out, ref_out, atol=5e-2, rtol=5e-2):
        raise AssertionError("output mismatch on the gumbel path")

    print("KERNEL_OK")
</pallas_src>

<mosaic_0001>
module attributes {stable_mosaic.version = 11 : i64} {
  func.func @_gumbel_attn_kernel(%arg0: i32, %arg1: i32, %arg2: memref<1xi32, #tpu.memory_space<smem>>, %arg3: memref<1x8x32xbf16, #tpu.memory_space<vmem>>, %arg4: memref<1x8x32xbf16, #tpu.memory_space<vmem>>, %arg5: memref<32x32xbf16, #tpu.memory_space<vmem>>, %arg6: memref<1x32xf32, #tpu.memory_space<vmem>>, %arg7: memref<32x32xbf16, #tpu.memory_space<vmem>>, %arg8: memref<1x32xf32, #tpu.memory_space<vmem>>, %arg9: memref<8x8xbf16, #tpu.memory_space<vmem>>, %arg10: memref<1x8xf32, #tpu.memory_space<vmem>>, %arg11: memref<32x32xbf16, #tpu.memory_space<vmem>>, %arg12: memref<1x32xf32, #tpu.memory_space<vmem>>, %arg13: memref<1x8x32xf32, #tpu.memory_space<vmem>>, %arg14: memref<1x8x4xi32, #tpu.memory_space<vmem>>, %arg15: memref<8x32xbf16, #tpu.memory_space<vmem>>, %arg16: memref<8x32xf32, #tpu.memory_space<vmem>>) attributes {dimension_semantics = [#tpu.dimension_semantics<parallel>, #tpu.dimension_semantics<arbitrary>], iteration_bounds = array<i64: 2, 1>, scalar_prefetch = 1 : i64, scratch_operands = 2 : i64, tpu.core_type = #tpu.core_type<tc>, window_params = [{transform_indices = @transform_0, window_bounds = array<i64: 1, 8, 32>}, {transform_indices = @transform_1, window_bounds = array<i64: 1, 8, 32>}, {pipeline_mode = #tpu.pipeline_mode<synchronous>, transform_indices = @transform_2, window_bounds = array<i64: 32, 32>}, {pipeline_mode = #tpu.pipeline_mode<synchronous>, transform_indices = @transform_3, window_bounds = array<i64: 1, 32>}, {pipeline_mode = #tpu.pipeline_mode<synchronous>, transform_indices = @transform_4, window_bounds = array<i64: 32, 32>}, {pipeline_mode = #tpu.pipeline_mode<synchronous>, transform_indices = @transform_5, window_bounds = array<i64: 1, 32>}, {pipeline_mode = #tpu.pipeline_mode<synchronous>, transform_indices = @transform_6, window_bounds = array<i64: 8, 8>}, {pipeline_mode = #tpu.pipeline_mode<synchronous>, transform_indices = @transform_7, window_bounds = array<i64: 1, 8>}, {pipeline_mode = #tpu.pipeline_mode<synchronous>, transform_indices = @transform_8, window_bounds = array<i64: 32, 32>}, {pipeline_mode = #tpu.pipeline_mode<synchronous>, transform_indices = @transform_9, window_bounds = array<i64: 1, 32>}, {transform_indices = @transform_10, window_bounds = array<i64: 1, 8, 32>}, {transform_indices = @transform_11, window_bounds = array<i64: 1, 8, 4>}]} {
    %c0_i32 = arith.constant 0 : i32
    %0 = arith.cmpi eq, %arg1, %c0_i32 : i32
    %1 = arith.extui %0 : i1 to i32
    %c0_i32_0 = arith.constant 0 : i32
    %2 = arith.cmpi ne, %1, %c0_i32_0 : i32
    scf.if %2 {
      %c0_74 = arith.constant 0 : index
      %c0_75 = arith.constant 0 : index
      %c0_76 = arith.constant 0 : index
      %122 = vector.load %arg4[%c0_74, %c0_75, %c0_76] : memref<1x8x32xbf16, #tpu.memory_space<vmem>>, vector<1x8x32xbf16>
      %123 = vector.shape_cast %122 : vector<1x8x32xbf16> to vector<8x32xbf16>
      %c0_77 = arith.constant 0 : index
      %c0_78 = arith.constant 0 : index
      %124 = vector.load %arg7[%c0_77, %c0_78] : memref<32x32xbf16, #tpu.memory_space<vmem>>, vector<32x32xbf16>
      %cst_79 = arith.constant dense<0.000000e+00> : vector<8x32xf32>
      %125 = tpu.matmul %123, %124, %cst_79 {dimension_numbers = #tpu.dot_dimension_numbers<[1], [0], [0], [1], [0, 0, 1, 1], [], []>} : vector<8x32xbf16>, vector<32x32xbf16>, vector<8x32xf32> -> vector<8x32xf32>
      %c0_80 = arith.constant 0 : index
      %c0_81 = arith.constant 0 : index
      %126 = vector.load %arg8[%c0_80, %c0_81] : memref<1x32xf32, #tpu.memory_space<vmem>>, vector<1x32xf32>
      %127 = vector.broadcast %126 : vector<1x32xf32> to vector<8x32xf32>
      %128 = arith.addf %125, %127 : vector<8x32xf32>
      %129 = arith.truncf %128 : vector<8x32xf32> to vector<8x32xbf16>
      %c0_82 = arith.constant 0 : index
      %c0_83 = arith.constant 0 : index
      %130 = vector.load %arg15[%c0_82, %c0_83] : memref<8x32xbf16, #tpu.memory_space<vmem>>, vector<8x32xbf16>
      tpu.vector_store %arg15[%c0_82, %c0_83], %129 {strides = array<i32>} : memref<8x32xbf16, #tpu.memory_space<vmem>>, vector<8x32xbf16>,
    } else {
    }
    %c0 = arith.constant 0 : index
    %c0_1 = arith.constant 0 : index
    %c0_2 = arith.constant 0 : index
    %3 = vector.load %arg3[%c0, %c0_1, %c0_2] : memref<1x8x32xbf16, #tpu.memory_space<vmem>>, vector<1x8x32xbf16>
    %4 = vector.shape_cast %3 : vector<1x8x32xbf16> to vector<8x32xbf16>
    %c0_3 = arith.constant 0 : index
    %c0_4 = arith.constant 0 : index
    %5 = vector.load %arg5[%c0_3, %c0_4] : memref<32x32xbf16, #tpu.memory_space<vmem>>, vector<32x32xbf16>
    %cst = arith.constant dense<0.000000e+00> : vector<8x32xf32>
    %6 = tpu.matmul %4, %5, %cst {dimension_numbers = #tpu.dot_dimension_numbers<[1], [0], [0], [1], [0, 0, 1, 1], [], []>} : vector<8x32xbf16>, vector<32x32xbf16>, vector<8x32xf32> -> vector<8x32xf32>
    %c0_5 = arith.constant 0 : index
    %c0_6 = arith.constant 0 : index
    %7 = vector.load %arg6[%c0_5, %c0_6] : memref<1x32xf32, #tpu.memory_space<vmem>>, vector<1x32xf32>
    %8 = vector.broadcast %7 : vector<1x32xf32> to vector<8x32xf32>
    %9 = arith.addf %6, %8 : vector<8x32xf32>
    %10 = arith.truncf %9 : vector<8x32xf32> to vector<8x32xbf16>
    %11 = tpu.iota {dimensions = array<i32: 1>} : vector<8x8xi32>
    %12 = vector.extract_strided_slice %10 {offsets = [0, 0], sizes = [8, 8], strides = [1, 1]} : vector<8x32xbf16> to vector<8x8xbf16>
    %c0_7 = arith.constant 0 : index
    %c0_8 = arith.constant 0 : index
    %13 = vector.load %arg9[%c0_7, %c0_8] : memref<8x8xbf16, #tpu.memory_space<vmem>>, vector<8x8xbf16>
    %cst_9 = arith.constant dense<0.000000e+00> : vector<8x8xf32>
    %14 = tpu.matmul %12, %13, %cst_9 {dimension_numbers = #tpu.dot_dimension_numbers<[1], [0], [0], [1], [0, 0, 1, 1], [], []>} : vector<8x8xbf16>, vector<8x8xbf16>, vector<8x8xf32> -> vector<8x8xf32>
    %c0_10 = arith.constant 0 : index
    %c0_11 = arith.constant 0 : index
    %15 = vector.load %arg10[%c0_10, %c0_11] : memref<1x8xf32, #tpu.memory_space<vmem>>, vector<1x8xf32>
    %16 = vector.broadcast %15 : vector<1x8xf32> to vector<8x8xf32>
    %17 = arith.addf %14, %16 : vector<8x8xf32>
    %cst_12 = arith.constant dense<0xFF800000> : vector<8xf32>
    %18 = vector.multi_reduction <maximumf>, %17, %cst_12 [1] : vector<8x8xf32> to vector<8xf32>
    %19 = vector.shape_cast %18 : vector<8xf32> to vector<8x1xf32>
    %20 = vector.broadcast %19 : vector<8x1xf32> to vector<8x8xf32>
    %21 = arith.cmpf oeq, %17, %20 : vector<8x8xf32>
    %c8_i32 = arith.constant 8 : i32
    %22 = vector.broadcast %c8_i32 : i32 to vector<8x8xi32>
    %23 = arith.select %21, %11, %22 : vector<8x8xi1>, vector<8x8xi32>
    %cst_13 = arith.constant dense<2147483647> : vector<8xi32>
    %24 = vector.multi_reduction <minsi>, %23, %cst_13 [1] : vector<8x8xi32> to vector<8xi32>
    %25 = vector.shape_cast %24 : vector<8xi32> to vector<8x1xi32>
    %c0_14 = arith.constant 0 : index
    %c0_15 = arith.constant 0 : index
    %c0_16 = arith.constant 0 : index
    %26 = vector.load %arg14[%c0_14, %c0_15, %c0_16] : memref<1x8x4xi32, #tpu.memory_space<vmem>>, vector<1x8x1xi32>
    %27 = vector.shape_cast %26 : vector<1x8x1xi32> to vector<8x1xi32>
    %28 = vector.shape_cast %25 : vector<8x1xi32> to vector<1x8x1xi32>
    tpu.vector_store %arg14[%c0_14, %c0_15, %c0_16], %28 {strides = array<i32>} : memref<1x8x4xi32, #tpu.memory_space<vmem>>, vector<1x8x1xi32>,
    %29 = vector.broadcast %25 : vector<8x1xi32> to vector<8x8xi32>
    %30 = arith.cmpi eq, %11, %29 : vector<8x8xi32>
    %31 = arith.extui %30 : vector<8x8xi1> to vector<8x8xi32>
    %32 = arith.sitofp %31 : vector<8x8xi32> to vector<8x8xf32>
    %33 = arith.truncf %32 : vector<8x8xf32> to vector<8x8xbf16>
    %c0_17 = arith.constant 0 : index
    %c0_18 = arith.constant 0 : index
    %34 = vector.load %arg15[%c0_17, %c0_18] : memref<8x32xbf16, #tpu.memory_space<vmem>>, vector<8x8xbf16>
    %cst_19 = arith.constant dense<0.000000e+00> : vector<8x8xf32>
    %35 = tpu.matmul %33, %34, %cst_19 {dimension_numbers = #tpu.dot_dimension_numbers<[1], [0], [0], [1], [0, 0, 1, 1], [], []>} : vector<8x8xbf16>, vector<8x8xbf16>, vector<8x8xf32> -> vector<8x8xf32>
    %c0_20 = arith.constant 0 : index
    %c0_21 = arith.constant 0 : index
    %36 = vector.load %arg16[%c0_20, %c0_21] : memref<8x32xf32, #tpu.memory_space<vmem>>, vector<8x8xf32>
    tpu.vector_store %arg16[%c0_20, %c0_21], %35 {strides = array<i32>} : memref<8x32xf32, #tpu.memory_space<vmem>>, vector<8x8xf32>,
    %37 = vector.extract_strided_slice %10 {offsets = [0, 8], sizes = [8, 8], strides = [1, 1]} : vector<8x32xbf16> to vector<8x8xbf16>
    %c0_22 = arith.constant 0 : index
    %c0_23 = arith.constant 0 : index
    %38 = vector.load %arg9[%c0_22, %c0_23] : memref<8x8xbf16, #tpu.memory_space<vmem>>, vector<8x8xbf16>
    %cst_24 = arith.constant dense<0.000000e+00> : vector<8x8xf32>
    %39 = tpu.matmul %37, %38, %cst_24 {dimension_numbers = #tpu.dot_dimension_numbers<[1], [0], [0], [1], [0, 0, 1, 1], [], []>} : vector<8x8xbf16>, vector<8x8xbf16>, vector<8x8xf32> -> vector<8x8xf32>
    %c0_25 = arith.constant 0 : index
    %c0_26 = arith.constant 0 : index
    %40 = vector.load %arg10[%c0_25, %c0_26] : memref<1x8xf32, #tpu.memory_space<vmem>>, vector<1x8xf32>
    %41 = vector.broadcast %40 : vector<1x8xf32> to vector<8x8xf32>
    %42 = arith.addf %39, %41 : vector<8x8xf32>
    %cst_27 = arith.constant dense<0xFF800000> : vector<8xf32>
    %43 = vector.multi_reduction <maximumf>, %42, %cst_27 [1] : vector<8x8xf32> to vector<8xf32>
    %44 = vector.shape_cast %43 : vector<8xf32> to vector<8x1xf32>
    %45 = vector.broadcast %44 : vector<8x1xf32> to vector<8x8xf32>
    %46 = arith.cmpf oeq, %42, %45 : vector<8x8xf32>
    %c8_i32_28 = arith.constant 8 : i32
    %47 = vector.broadcast %c8_i32_28 : i32 to vector<8x8xi32>
    %48 = arith.select %46, %11, %47 : vector<8x8xi1>, vector<8x8xi32>
    %cst_29 = arith.constant dense<2147483647> : vector<8xi32>
    %49 = vector.multi_reduction <minsi>, %48, %cst_29 [1] : vector<8x8xi32> to vector<8xi32>
    %50 = vector.shape_cast %49 : vector<8xi32> to vector<8x1xi32>
    %c0_30 = arith.constant 0 : index
    %c0_31 = arith.constant 0 : index
    %c1 = arith.constant 1 : index
    %51 = vector.load %arg14[%c0_30, %c0_31, %c1] : memref<1x8x4xi32, #tpu.memory_space<vmem>>, vector<1x8x1xi32>
    %52 = vector.shape_cast %51 : vector<1x8x1xi32> to vector<8x1xi32>
    %53 = vector.shape_cast %50 : vector<8x1xi32> to vector<1x8x1xi32>
    tpu.vector_store %arg14[%c0_30, %c0_31, %c1], %53 {strides = array<i32>} : memref<1x8x4xi32, #tpu.memory_space<vmem>>, vector<1x8x1xi32>,
    %54 = vector.broadcast %50 : vector<8x1xi32> to vector<8x8xi32>
    %55 = arith.cmpi eq, %11, %54 : vector<8x8xi32>
    %56 = arith.extui %55 : vector<8x8xi1> to vector<8x8xi32>
    %57 = arith.sitofp %56 : vector<8x8xi32> to vector<8x8xf32>
    %58 = arith.truncf %57 : vector<8x8xf32> to vector<8x8xbf16>
    %c0_32 = arith.constant 0 : index
    %c8 = arith.constant 8 : index
    %59 = vector.load %arg15[%c0_32, %c8] : memref<8x32xbf16, #tpu.memory_space<vmem>>, vector<8x8xbf16>
    %cst_33 = arith.constant dense<0.000000e+00> : vector<8x8xf32>
    %60 = tpu.matmul %58, %59, %cst_33 {dimension_numbers = #tpu.dot_dimension_numbers<[1], [0], [0], [1], [0, 0, 1, 1], [], []>} : vector<8x8xbf16>, vector<8x8xbf16>, vector<8x8xf32> -> vector<8x8xf32>
    %c0_34 = arith.constant 0 : index
    %c8_35 = arith.constant 8 : index
    %61 = vector.load %arg16[%c0_34, %c8_35] : memref<8x32xf32, #tpu.memory_space<vmem>>, vector<8x8xf32>
    tpu.vector_store %arg16[%c0_34, %c8_35], %60 {strides = array<i32>} : memref<8x32xf32, #tpu.memory_space<vmem>>, vector<8x8xf32>,
    %62 = vector.extract_strided_slice %10 {offsets = [0, 16], sizes = [8, 8], strides = [1, 1]} : vector<8x32xbf16> to vector<8x8xbf16>
    %c0_36 = arith.constant 0 : index
    %c0_37 = arith.constant 0 : index
    %63 = vector.load %arg9[%c0_36, %c0_37] : memref<8x8xbf16, #tpu.memory_space<vmem>>, vector<8x8xbf16>
    %cst_38 = arith.constant dense<0.000000e+00> : vector<8x8xf32>
    %64 = tpu.matmul %62, %63, %cst_38 {dimension_numbers = #tpu.dot_dimension_numbers<[1], [0], [0], [1], [0, 0, 1, 1], [], []>} : vector<8x8xbf16>, vector<8x8xbf16>, vector<8x8xf32> -> vector<8x8xf32>
    %c0_39 = arith.constant 0 : index
    %c0_40 = arith.constant 0 : index
    %65 = vector.load %arg10[%c0_39, %c0_40] : memref<1x8xf32, #tpu.memory_space<vmem>>, vector<1x8xf32>
    %66 = vector.broadcast %65 : vector<1x8xf32> to vector<8x8xf32>
    %67 = arith.addf %64, %66 : vector<8x8xf32>
    %cst_41 = arith.constant dense<0xFF800000> : vector<8xf32>
    %68 = vector.multi_reduction <maximumf>, %67, %cst_41 [1] : vector<8x8xf32> to vector<8xf32>
    %69 = vector.shape_cast %68 : vector<8xf32> to vector<8x1xf32>
    %70 = vector.broadcast %69 : vector<8x1xf32> to vector<8x8xf32>
    %71 = arith.cmpf oeq, %67, %70 : vector<8x8xf32>
    %c8_i32_42 = arith.constant 8 : i32
    %72 = vector.broadcast %c8_i32_42 : i32 to vector<8x8xi32>
    %73 = arith.select %71, %11, %72 : vector<8x8xi1>, vector<8x8xi32>
    %cst_43 = arith.constant dense<2147483647> : vector<8xi32>
    %74 = vector.multi_reduction <minsi>, %73, %cst_43 [1] : vector<8x8xi32> to vector<8xi32>
    %75 = vector.shape_cast %74 : vector<8xi32> to vector<8x1xi32>
    %c0_44 = arith.constant 0 : index
    %c0_45 = arith.constant 0 : index
    %c2 = arith.constant 2 : index
    %76 = vector.load %arg14[%c0_44, %c0_45, %c2] : memref<1x8x4xi32, #tpu.memory_space<vmem>>, vector<1x8x1xi32>
    %77 = vector.shape_cast %76 : vector<1x8x1xi32> to vector<8x1xi32>
    %78 = vector.shape_cast %75 : vector<8x1xi32> to vector<1x8x1xi32>
    tpu.vector_store %arg14[%c0_44, %c0_45, %c2], %78 {strides = array<i32>} : memref<1x8x4xi32, #tpu.memory_space<vmem>>, vector<1x8x1xi32>,
    %79 = vector.broadcast %75 : vector<8x1xi32> to vector<8x8xi32>
    %80 = arith.cmpi eq, %11, %79 : vector<8x8xi32>
    %81 = arith.extui %80 : vector<8x8xi1> to vector<8x8xi32>
    %82 = arith.sitofp %81 : vector<8x8xi32> to vector<8x8xf32>
    %83 = arith.truncf %82 : vector<8x8xf32> to vector<8x8xbf16>
    %c0_46 = arith.constant 0 : index
    %c16 = arith.constant 16 : index
    %84 = vector.load %arg15[%c0_46, %c16] : memref<8x32xbf16, #tpu.memory_space<vmem>>, vector<8x8xbf16>
    %cst_47 = arith.constant dense<0.000000e+00> : vector<8x8xf32>
    %85 = tpu.matmul %83, %84, %cst_47 {dimension_numbers = #tpu.dot_dimension_numbers<[1], [0], [0], [1], [0, 0, 1, 1], [], []>} : vector<8x8xbf16>, vector<8x8xbf16>, vector<8x8xf32> -> vector<8x8xf32>
    %c0_48 = arith.constant 0 : index
    %c16_49 = arith.constant 16 : index
    %86 = vector.load %arg16[%c0_48, %c16_49] : memref<8x32xf32, #tpu.memory_space<vmem>>, vector<8x8xf32>
    tpu.vector_store %arg16[%c0_48, %c16_49], %85 {strides = array<i32>} : memref<8x32xf32, #tpu.memory_space<vmem>>, vector<8x8xf32>,
    %87 = vector.extract_strided_slice %10 {offsets = [0, 24], sizes = [8, 8], strides = [1, 1]} : vector<8x32xbf16> to vector<8x8xbf16>
    %c0_50 = arith.constant 0 : index
    %c0_51 = arith.constant 0 : index
    %88 = vector.load %arg9[%c0_50, %c0_51] : memref<8x8xbf16, #tpu.memory_space<vmem>>, vector<8x8xbf16>
    %cst_52 = arith.constant dense<0.000000e+00> : vector<8x8xf32>
    %89 = tpu.matmul %87, %88, %cst_52 {dimension_numbers = #tpu.dot_dimension_numbers<[1], [0], [0], [1], [0, 0, 1, 1], [], []>} : vector<8x8xbf16>, vector<8x8xbf16>, vector<8x8xf32> -> vector<8x8xf32>
    %c0_53 = arith.constant 0 : index
    %c0_54 = arith.constant 0 : index
    %90 = vector.load %arg10[%c0_53, %c0_54] : memref<1x8xf32, #tpu.memory_space<vmem>>, vector<1x8xf32>
    %91 = vector.broadcast %90 : vector<1x8xf32> to vector<8x8xf32>
    %92 = arith.addf %89, %91 : vector<8x8xf32>
    %cst_55 = arith.constant dense<0xFF800000> : vector<8xf32>
    %93 = vector.multi_reduction <maximumf>, %92, %cst_55 [1] : vector<8x8xf32> to vector<8xf32>
    %94 = vector.shape_cast %93 : vector<8xf32> to vector<8x1xf32>
    %95 = vector.broadcast %94 : vector<8x1xf32> to vector<8x8xf32>
    %96 = arith.cmpf oeq, %92, %95 : vector<8x8xf32>
    %c8_i32_56 = arith.constant 8 : i32
    %97 = vector.broadcast %c8_i32_56 : i32 to vector<8x8xi32>
    %98 = arith.select %96, %11, %97 : vector<8x8xi1>, vector<8x8xi32>
    %cst_57 = arith.constant dense<2147483647> : vector<8xi32>
    %99 = vector.multi_reduction <minsi>, %98, %cst_57 [1] : vector<8x8xi32> to vector<8xi32>
    %100 = vector.shape_cast %99 : vector<8xi32> to vector<8x1xi32>
    %c0_58 = arith.constant 0 : index
    %c0_59 = arith.constant 0 : index
    %c3 = arith.constant 3 : index
    %101 = vector.load %arg14[%c0_58, %c0_59, %c3] : memref<1x8x4xi32, #tpu.memory_space<vmem>>, vector<1x8x1xi32>
    %102 = vector.shape_cast %101 : vector<1x8x1xi32> to vector<8x1xi32>
    %103 = vector.shape_cast %100 : vector<8x1xi32> to vector<1x8x1xi32>
    tpu.vector_store %arg14[%c0_58, %c0_59, %c3], %103 {strides = array<i32>} : memref<1x8x4xi32, #tpu.memory_space<vmem>>, vector<1x8x1xi32>,
    %104 = vector.broadcast %100 : vector<8x1xi32> to vector<8x8xi32>
    %105 = arith.cmpi eq, %11, %104 : vector<8x8xi32>
    %106 = arith.extui %105 : vector<8x8xi1> to vector<8x8xi32>
    %107 = arith.sitofp %106 : vector<8x8xi32> to vector<8x8xf32>
    %108 = arith.truncf %107 : vector<8x8xf32> to vector<8x8xbf16>
    %c0_60 = arith.constant 0 : index
    %c24 = arith.constant 24 : index
    %109 = vector.load %arg15[%c0_60, %c24] : memref<8x32xbf16, #tpu.memory_space<vmem>>, vector<8x8xbf16>
    %cst_61 = arith.constant dense<0.000000e+00> : vector<8x8xf32>
    %110 = tpu.matmul %108, %109, %cst_61 {dimension_numbers = #tpu.dot_dimension_numbers<[1], [0], [0], [1], [0, 0, 1, 1], [], []>} : vector<8x8xbf16>, vector<8x8xbf16>, vector<8x8xf32> -> vector<8x8xf32>
    %c0_62 = arith.constant 0 : index
    %c24_63 = arith.constant 24 : index
    %111 = vector.load %arg16[%c0_62, %c24_63] : memref<8x32xf32, #tpu.memory_space<vmem>>, vector<8x8xf32>
    tpu.vector_store %arg16[%c0_62, %c24_63], %110 {strides = array<i32>} : memref<8x32xf32, #tpu.memory_space<vmem>>, vector<8x8xf32>,
    %c0_64 = arith.constant 0 : index
    %c0_65 = arith.constant 0 : index
    %112 = vector.load %arg16[%c0_64, %c0_65] : memref<8x32xf32, #tpu.memory_space<vmem>>, vector<8x32xf32>
    %113 = arith.truncf %112 : vector<8x32xf32> to vector<8x32xbf16>
    %c0_66 = arith.constant 0 : index
    %c0_67 = arith.constant 0 : index
    %114 = vector.load %arg11[%c0_66, %c0_67] : memref<32x32xbf16, #tpu.memory_space<vmem>>, vector<32x32xbf16>
    %cst_68 = arith.constant dense<0.000000e+00> : vector<8x32xf32>
    %115 = tpu.matmul %113, %114, %cst_68 {dimension_numbers = #tpu.dot_dimension_numbers<[1], [0], [0], [1], [0, 0, 1, 1], [], []>} : vector<8x32xbf16>, vector<32x32xbf16>, vector<8x32xf32> -> vector<8x32xf32>
    %c0_69 = arith.constant 0 : index
    %c0_70 = arith.constant 0 : index
    %116 = vector.load %arg12[%c0_69, %c0_70] : memref<1x32xf32, #tpu.memory_space<vmem>>, vector<1x32xf32>
    %117 = vector.broadcast %116 : vector<1x32xf32> to vector<8x32xf32>
    %118 = arith.addf %115, %117 : vector<8x32xf32>
    %c0_71 = arith.constant 0 : index
    %c0_72 = arith.constant 0 : index
    %c0_73 = arith.constant 0 : index
    %119 = vector.load %arg13[%c0_71, %c0_72, %c0_73] : memref<1x8x32xf32, #tpu.memory_space<vmem>>, vector<1x8x32xf32>
    %120 = vector.shape_cast %119 : vector<1x8x32xf32> to vector<8x32xf32>
    %121 = vector.shape_cast %118 : vector<8x32xf32> to vector<1x8x32xf32>
    tpu.vector_store %arg13[%c0_71, %c0_72, %c0_73], %121 {strides = array<i32>} : memref<1x8x32xf32, #tpu.memory_space<vmem>>, vector<1x8x32xf32>,
    return
  }
  func.func @transform_0(%arg0: i32, %arg1: i32, %arg2: memref<1xi32, #tpu.memory_space<smem>>) -> (i32, i32, i32) {
    %c0_i32 = arith.constant 0 : i32
    %c0_i32_0 = arith.constant 0 : i32
    return %arg0, %arg1, %c0_i32 : i32, i32, i32
  }
  func.func @transform_1(%arg0: i32, %arg1: i32, %arg2: memref<1xi32, #tpu.memory_space<smem>>) -> (i32, i32, i32) {
    %c0_i32 = arith.constant 0 : i32
    %c0_i32_0 = arith.constant 0 : i32
    %c0_i32_1 = arith.constant 0 : i32
    return %arg0, %c0_i32, %c0_i32_0 : i32, i32, i32
  }
  func.func @transform_2(%arg0: i32, %arg1: i32, %arg2: memref<1xi32, #tpu.memory_space<smem>>) -> (i32, i32) {
    %c0_i32 = arith.constant 0 : i32
    %c0_i32_0 = arith.constant 0 : i32
    %c0_i32_1 = arith.constant 0 : i32
    return %c0_i32, %c0_i32_0 : i32, i32
  }
  func.func @transform_3(%arg0: i32, %arg1: i32, %arg2: memref<1xi32, #tpu.memory_space<smem>>) -> (i32, i32) {
    %c0_i32 = arith.constant 0 : i32
    %c0_i32_0 = arith.constant 0 : i32
    %c0_i32_1 = arith.constant 0 : i32
    return %c0_i32, %c0_i32_0 : i32, i32
  }
  func.func @transform_4(%arg0: i32, %arg1: i32, %arg2: memref<1xi32, #tpu.memory_space<smem>>) -> (i32, i32) {
    %c0_i32 = arith.constant 0 : i32
    %c0_i32_0 = arith.constant 0 : i32
    %c0_i32_1 = arith.constant 0 : i32
    return %c0_i32, %c0_i32_0 : i32, i32
  }
  func.func @transform_5(%arg0: i32, %arg1: i32, %arg2: memref<1xi32, #tpu.memory_space<smem>>) -> (i32, i32) {
    %c0_i32 = arith.constant 0 : i32
    %c0_i32_0 = arith.constant 0 : i32
    %c0_i32_1 = arith.constant 0 : i32
    return %c0_i32, %c0_i32_0 : i32, i32
  }
  func.func @transform_6(%arg0: i32, %arg1: i32, %arg2: memref<1xi32, #tpu.memory_space<smem>>) -> (i32, i32) {
    %c0_i32 = arith.constant 0 : i32
    %c0_i32_0 = arith.constant 0 : i32
    %c0_i32_1 = arith.constant 0 : i32
    return %c0_i32, %c0_i32_0 : i32, i32
  }
  func.func @transform_7(%arg0: i32, %arg1: i32, %arg2: memref<1xi32, #tpu.memory_space<smem>>) -> (i32, i32) {
    %c0_i32 = arith.constant 0 : i32
    %c0_i32_0 = arith.constant 0 : i32
    %c0_i32_1 = arith.constant 0 : i32
    return %c0_i32, %c0_i32_0 : i32, i32
  }
  func.func @transform_8(%arg0: i32, %arg1: i32, %arg2: memref<1xi32, #tpu.memory_space<smem>>) -> (i32, i32) {
    %c0_i32 = arith.constant 0 : i32
    %c0_i32_0 = arith.constant 0 : i32
    %c0_i32_1 = arith.constant 0 : i32
    return %c0_i32, %c0_i32_0 : i32, i32
  }
  func.func @transform_9(%arg0: i32, %arg1: i32, %arg2: memref<1xi32, #tpu.memory_space<smem>>) -> (i32, i32) {
    %c0_i32 = arith.constant 0 : i32
    %c0_i32_0 = arith.constant 0 : i32
    %c0_i32_1 = arith.constant 0 : i32
    return %c0_i32, %c0_i32_0 : i32, i32
  }
  func.func @transform_10(%arg0: i32, %arg1: i32, %arg2: memref<1xi32, #tpu.memory_space<smem>>) -> (i32, i32, i32) {
    %c0_i32 = arith.constant 0 : i32
    %c0_i32_0 = arith.constant 0 : i32
    return %arg0, %arg1, %c0_i32 : i32, i32, i32
  }
  func.func @transform_11(%arg0: i32, %arg1: i32, %arg2: memref<1xi32, #tpu.memory_space<smem>>) -> (i32, i32, i32) {
    %c0_i32 = arith.constant 0 : i32
    %c0_i32_0 = arith.constant 0 : i32
    return %arg0, %arg1, %c0_i32 : i32, i32, i32
  }
}

</mosaic_0001>

<llo_original>
// kernel: tpu_custom_call.1
$region0: #{tpu_custom_call.1}
  #allocation0 [shape = 'u32[]', space=smem, size = 0x4, offset = 0x4, fixed_abs, tag = 'smem constant byte address 0x4 - core index']
  #allocation1 [shape = 'u32[72,128]{1,0:T(1,128)}', space=vmem, size = 0x9000, scoped, tag = 'internal scratch']
  #allocation2 [shape = 'bf16[8,32]{1,0:T(8,128)(2,1)}', space=vmem, size = 0x800, scoped, tag = 'scratch operand']
  #allocation3 [shape = 'f32[8,32]{1,0:T(8,128)}', space=vmem, size = 0x1000, scoped, tag = 'scratch operand']
  #allocation4 [shape = 's32[1]{0}', space=sflag, size = 0x4, scoped, tag = 'scoped memory for tpu_custom_call.1']
  #allocation5 [shape = 's32[1]{0:T(128)S(6)}', space=smem, size = 0x200, scoped, tag = 'prefetched SMEM operand 0']
  %s0 = inlined_call_operand.<no memory space> [shape: s32[1], index: 0, kind: input, shape index: {}]
  %s1 = inlined_call_operand.hbm [shape: bf16[2,8,32], index: 1, kind: input, shape index: {}]
  %s2 = inlined_call_operand.hbm [shape: bf16[2,8,32], index: 2, kind: input, shape index: {}]
  %s3 = inlined_call_operand.hbm [shape: bf16[32,32], index: 3, kind: input, shape index: {}]
  %s4 = inlined_call_operand.vmem [shape: f32[1,32], index: 4, kind: input, shape index: {}]
  %s5 = inlined_call_operand.hbm [shape: bf16[32,32], index: 5, kind: input, shape index: {}]
  %s6 = inlined_call_operand.vmem [shape: f32[1,32], index: 6, kind: input, shape index: {}]
  %s7 = inlined_call_operand.vmem [shape: bf16[8,8], index: 7, kind: input, shape index: {}]
  %s8 = inlined_call_operand.vmem [shape: f32[1,8], index: 8, kind: input, shape index: {}]
  %s9 = inlined_call_operand.hbm [shape: bf16[32,32], index: 9, kind: input, shape index: {}]
  %s10 = inlined_call_operand.vmem [shape: f32[1,32], index: 10, kind: input, shape index: {}]
  %s11 = inlined_call_operand.hbm [shape: f32[2,8,32], index: 11, kind: output, shape index: {0}]
  %s12 = inlined_call_operand.vmem [shape: s32[2,8,4], index: 12, kind: output, shape index: {1}]
  %13 = xla_tuple %s11, %s12
  %s14 = sld [smem:[#allocation0]]
  $region105: #{tpu_custom_call.1} parent=0
    _
  %s16 = ssub.s32 1, %s14
  %s17 = scalar_select 0, %s16, %s14
  %18 = sst [smem:[#allocation5]] %s0
  $region1: #{tpu_custom_call.1} parent=0
    #allocation6 [shape = 'u8[4096]{0}', space=vmem, size = 0x1000, scoped, tag = 'input window, operand 1']
    #allocation7 [shape = 's32[2]{0}', space=sflag, size = 0x8, scoped, tag = 'scoped memory for tpu_custom_call.1']
    #allocation8 [shape = 's32[2]{0}', space=sflag, size = 0x8, scoped, tag = 'scoped memory for tpu_custom_call.1']
    #allocation9 [shape = 'u8[4096]{0}', space=vmem, size = 0x1000, scoped, tag = 'input window, operand 2']
    #allocation10 [shape = 's32[2]{0}', space=sflag, size = 0x8, scoped, tag = 'scoped memory for tpu_custom_call.1']
    #allocation11 [shape = 'u8[8192]{0}', space=vmem, size = 0x2000, scoped, tag = 'input window, operand 3, single buffered']
    #allocation12 [shape = 'u8[8192]{0}', space=vmem, size = 0x2000, scoped, tag = 'input window, operand 5, single buffered']
    #allocation13 [shape = 's32[1]{0}', space=sflag, size = 0x4, scoped, tag = 'scoped memory for tpu_custom_call.1']
    #allocation14 [shape = 'u8[8192]{0}', space=vmem, size = 0x2000, scoped, tag = 'input window, operand 9, single buffered']
    #allocation15 [shape = 'u8[8192]{0}', space=vmem, size = 0x2000, scoped, tag = 'output window, operand 0']
    %19 = vsyncpa [#allocation7], 0
    %s20 = scalar_lea.sflag [#allocation7], 1
    %21 = vsyncpa %s20, 0
    %22 = vsyncpa [#allocation10], 0
    %s23 = scalar_lea.sflag [#allocation10], 1
    %24 = vsyncpa %s23, 0
    %25 = vsyncpa [#allocation13], 0
    %26 = vsyncpa [#allocation8], 0
    %s27 = scalar_lea.sflag [#allocation8], 1
    %28 = vsyncpa %s27, 0
    loop: start=0, step=1, limit=4
    $region2: #{tpu_custom_call.1} parent=1 // loop_pre_header
      _
    $region3: #{tpu_custom_call.1} parent=1 // loop_header
      %s30 = sphi 0, %s34
      %p31 = scmp.ge.s32.totalorder %s30, 4
      %s37 = sphi 0, %s49
      %s38 = sphi 0, %s45
      %s39 = sphi 0, %s37
      %s40 = sphi 0, %s38
      %s41 = sphi 0, %s39
      %s42 = sphi 0, %s40
      %s54 = sphi 0, %s56
      %s57 = sphi 0, %s54
      %s58 = sphi 0, %s57
      %s74 = sphi 0, %s58
      %s80 = sphi 0, %s82
      %s83 = sphi 0, %s80
      %s84 = sphi 0, %s83
      %s100 = sphi 0, %s84
      %s104 = sphi 0, %s104
      %s106 = sphi 0, %s104
      %s107 = sphi 0, %s106
      %s121 = sphi 0, %s107
      %s125 = sphi 0, %s125
      %s127 = sphi 0, %s125
      %s128 = sphi 0, %s127
      %s142 = sphi 0, %s128
      %s146 = sphi 0, %s146
      %s148 = sphi 0, %s146
      %s149 = sphi 0, %s148
      %s163 = sphi 0, %s149
      %s167 = sphi 0, %s167
      %s169 = sphi 0, %s167
      %s170 = sphi 0, %s169
      %s184 = sphi 0, %s170
      %s188 = sphi 0, %s188
      %s190 = sphi 0, %s188
      %s191 = sphi 0, %s190
      %s205 = sphi 0, %s191
      %s209 = sphi 0, %s209
      %s211 = sphi 0, %s209
      %s212 = sphi 0, %s211
      %s226 = sphi 0, %s212
      %s230 = sphi 0, %s230
      %s232 = sphi 0, %s230
      %s233 = sphi 0, %s232
      %s247 = sphi 0, %s233
      %s251 = sphi 0, %s251
      %s253 = sphi 0, %s251
      %s254 = sphi 0, %s253
      %s268 = sphi 0, %s254
      %s276 = sphi 0, %s278
      %s279 = sphi 0, %s276
      %s280 = sphi 0, %s279
      %s296 = sphi 0, %s280
      %s304 = sphi 0, %s306
      %s307 = sphi 0, %s304
      %s308 = sphi 0, %s307
      %s324 = sphi 0, %s308
    $region4: #{tpu_custom_call.1} parent=1 // loop_header_branch
      %33 = sbr.rel (%p31) target = $region8
    $region5: #{tpu_custom_call.1} parent=1 // loop_body
      %s35 = ssub.s32 %s30, 1
      %s36 = ssub.s32 %s30, 2
      %s43 = sadd.s32 1, %s38
      %p44 = scmp.ge.s32.totalorder %s43, 1
      %s45 = scalar_select %p44, 0, %s43
      %s46 = sadd.s32 1, %s37
      %s47 = scalar_select %p44, %s46, %s37
      %p48 = scmp.ge.s32.totalorder %s47, 2
      %s49 = scalar_select %p48, 0, %s47
      %s50 = ssub.s32 %s37, %s49
      %s51 = ssub.s32 %s38, %s45
      %s52 = sor.u32 %s50, %s51
      %p53 = scmp.eq.s32.totalorder %s52, 0
      %s55 = sadd.s32 %s54, 1
      %s56 = scalar_select %p53, %s54, %s55
      %p59 = pneg %p53
      %p60 = scmp.eq.s32.totalorder %s30, 1
      %p61 = por %p59, %p60
      %p62 = scmp.ne.s32.totalorder %s54, %s57
      %p63 = scmp.eq.s32.totalorder %s30, 0
      %p64 = por %p62, %p63
      %p65 = scmp.ne.s32.totalorder %s54, %s57
      %p66 = scmp.eq.s32.totalorder %s35, 1
      %p67 = por %p65, %p66
      %p68 = scmp.ne.s32.totalorder %s57, %s58
      %p69 = scmp.eq.s32.totalorder %s35, 0
      %p70 = por %p68, %p69
      %p71 = scmp.ne.s32.totalorder %s57, %s58
      %p72 = scmp.eq.s32.totalorder %s36, 1
      %p73 = por %p71, %p72
      %p75 = scmp.ne.s32.totalorder %s58, %s74
      %p76 = scmp.eq.s32.totalorder %s36, 0
      %p77 = por %p75, %p76
      %s78 = ssub.s32 %s37, %s49
      %p79 = scmp.eq.s32.totalorder %s78, 0
      %s81 = sadd.s32 %s80, 1
      %s82 = scalar_select %p79, %s80, %s81
      %p85 = pneg %p79
      %p86 = scmp.eq.s32.totalorder %s30, 1
      %p87 = por %p85, %p86
      %p88 = scmp.ne.s32.totalorder %s80, %s83
      %p89 = scmp.eq.s32.totalorder %s30, 0
      %p90 = por %p88, %p89
      %p91 = scmp.ne.s32.totalorder %s80, %s83
      %p92 = scmp.eq.s32.totalorder %s35, 1
      %p93 = por %p91, %p92
      %p94 = scmp.ne.s32.totalorder %s83, %s84
      %p95 = scmp.eq.s32.totalorder %s35, 0
      %p96 = por %p94, %p95
      %p97 = scmp.ne.s32.totalorder %s83, %s84
      %p98 = scmp.eq.s32.totalorder %s36, 1
      %p99 = por %p97, %p98
      %p101 = scmp.ne.s32.totalorder %s84, %s100
      %p102 = scmp.eq.s32.totalorder %s36, 0
      %p103 = por %p101, %p102
      %s105 = sadd.s32 %s104, 1
      %p108 = scmp.eq.s32.totalorder %s30, 1
      %p109 = scmp.ne.s32.totalorder %s104, %s106
      %p110 = scmp.eq.s32.totalorder %s30, 0
      %p111 = por %p109, %p110
      %p112 = scmp.ne.s32.totalorder %s104, %s106
      %p113 = scmp.eq.s32.totalorder %s35, 1
      %p114 = por %p112, %p113
      %p115 = scmp.ne.s32.totalorder %s106, %s107
      %p116 = scmp.eq.s32.totalorder %s35, 0
      %p117 = por %p115, %p116
      %p118 = scmp.ne.s32.totalorder %s106, %s107
      %p119 = scmp.eq.s32.totalorder %s36, 1
      %p120 = por %p118, %p119
      %p122 = scmp.ne.s32.totalorder %s107, %s121
      %p123 = scmp.eq.s32.totalorder %s36, 0
      %p124 = por %p122, %p123
      %s126 = sadd.s32 %s125, 1
      %p129 = scmp.eq.s32.totalorder %s30, 1
      %p130 = scmp.ne.s32.totalorder %s125, %s127
      %p131 = scmp.eq.s32.totalorder %s30, 0
      %p132 = por %p130, %p131
      %p133 = scmp.ne.s32.totalorder %s125, %s127
      %p134 = scmp.eq.s32.totalorder %s35, 1
      %p135 = por %p133, %p134
      %p136 = scmp.ne.s32.totalorder %s127, %s128
      %p137 = scmp.eq.s32.totalorder %s35, 0
      %p138 = por %p136, %p137
      %p139 = scmp.ne.s32.totalorder %s127, %s128
      %p140 = scmp.eq.s32.totalorder %s36, 1
      %p141 = por %p139, %p140
      %p143 = scmp.ne.s32.totalorder %s128, %s142
      %p144 = scmp.eq.s32.totalorder %s36, 0
      %p145 = por %p143, %p144
      %s147 = sadd.s32 %s146, 1
      %p150 = scmp.eq.s32.totalorder %s30, 1
      %p151 = scmp.ne.s32.totalorder %s146, %s148
      %p152 = scmp.eq.s32.totalorder %s30, 0
      %p153 = por %p151, %p152
      %p154 = scmp.ne.s32.totalorder %s146, %s148
      %p155 = scmp.eq.s32.totalorder %s35, 1
      %p156 = por %p154, %p155
      %p157 = scmp.ne.s32.totalorder %s148, %s149
      %p158 = scmp.eq.s32.totalorder %s35, 0
      %p159 = por %p157, %p158
      %p160 = scmp.ne.s32.totalorder %s148, %s149
      %p161 = scmp.eq.s32.totalorder %s36, 1
      %p162 = por %p160, %p161
      %p164 = scmp.ne.s32.totalorder %s149, %s163
      %p165 = scmp.eq.s32.totalorder %s36, 0
      %p166 = por %p164, %p165
      %s168 = sadd.s32 %s167, 1
      %p171 = scmp.eq.s32.totalorder %s30, 1
      %p172 = scmp.ne.s32.totalorder %s167, %s169
      %p173 = scmp.eq.s32.totalorder %s30, 0
      %p174 = por %p172, %p173
      %p175 = scmp.ne.s32.totalorder %s167, %s169
      %p176 = scmp.eq.s32.totalorder %s35, 1
      %p177 = por %p175, %p176
      %p178 = scmp.ne.s32.totalorder %s169, %s170
      %p179 = scmp.eq.s32.totalorder %s35, 0
      %p180 = por %p178, %p179
      %p181 = scmp.ne.s32.totalorder %s169, %s170
      %p182 = scmp.eq.s32.totalorder %s36, 1
      %p183 = por %p181, %p182
      %p185 = scmp.ne.s32.totalorder %s170, %s184
      %p186 = scmp.eq.s32.totalorder %s36, 0
      %p187 = por %p185, %p186
      %s189 = sadd.s32 %s188, 1
      %p192 = scmp.eq.s32.totalorder %s30, 1
      %p193 = scmp.ne.s32.totalorder %s188, %s190
      %p194 = scmp.eq.s32.totalorder %s30, 0
      %p195 = por %p193, %p194
      %p196 = scmp.ne.s32.totalorder %s188, %s190
      %p197 = scmp.eq.s32.totalorder %s35, 1
      %p198 = por %p196, %p197
      %p199 = scmp.ne.s32.totalorder %s190, %s191
      %p200 = scmp.eq.s32.totalorder %s35, 0
      %p201 = por %p199, %p200
      %p202 = scmp.ne.s32.totalorder %s190, %s191
      %p203 = scmp.eq.s32.totalorder %s36, 1
      %p204 = por %p202, %p203
      %p206 = scmp.ne.s32.totalorder %s191, %s205
      %p207 = scmp.eq.s32.totalorder %s36, 0
      %p208 = por %p206, %p207
      %s210 = sadd.s32 %s209, 1
      %p213 = scmp.eq.s32.totalorder %s30, 1
      %p214 = scmp.ne.s32.totalorder %s209, %s211
      %p215 = scmp.eq.s32.totalorder %s30, 0
      %p216 = por %p214, %p215
      %p217 = scmp.ne.s32.totalorder %s209, %s211
      %p218 = scmp.eq.s32.totalorder %s35, 1
      %p219 = por %p217, %p218
      %p220 = scmp.ne.s32.totalorder %s211, %s212
      %p221 = scmp.eq.s32.totalorder %s35, 0
      %p222 = por %p220, %p221
      %p223 = scmp.ne.s32.totalorder %s211, %s212
      %p224 = scmp.eq.s32.totalorder %s36, 1
      %p225 = por %p223, %p224
      %p227 = scmp.ne.s32.totalorder %s212, %s226
      %p228 = scmp.eq.s32.totalorder %s36, 0
      %p229 = por %p227, %p228
      %s231 = sadd.s32 %s230, 1
      %p234 = scmp.eq.s32.totalorder %s30, 1
      %p235 = scmp.ne.s32.totalorder %s230, %s232
      %p236 = scmp.eq.s32.totalorder %s30, 0
      %p237 = por %p235, %p236
      %p238 = scmp.ne.s32.totalorder %s230, %s232
      %p239 = scmp.eq.s32.totalorder %s35, 1
      %p240 = por %p238, %p239
      %p241 = scmp.ne.s32.totalorder %s232, %s233
      %p242 = scmp.eq.s32.totalorder %s35, 0
      %p243 = por %p241, %p242
      %p244 = scmp.ne.s32.totalorder %s232, %s233
      %p245 = scmp.eq.s32.totalorder %s36, 1
      %p246 = por %p244, %p245
      %p248 = scmp.ne.s32.totalorder %s233, %s247
      %p249 = scmp.eq.s32.totalorder %s36, 0
      %p250 = por %p248, %p249
      %s252 = sadd.s32 %s251, 1
      %p255 = scmp.eq.s32.totalorder %s30, 1
      %p256 = scmp.ne.s32.totalorder %s251, %s253
      %p257 = scmp.eq.s32.totalorder %s30, 0
      %p258 = por %p256, %p257
      %p259 = scmp.ne.s32.totalorder %s251, %s253
      %p260 = scmp.eq.s32.totalorder %s35, 1
      %p261 = por %p259, %p260
      %p262 = scmp.ne.s32.totalorder %s253, %s254
      %p263 = scmp.eq.s32.totalorder %s35, 0
      %p264 = por %p262, %p263
      %p265 = scmp.ne.s32.totalorder %s253, %s254
      %p266 = scmp.eq.s32.totalorder %s36, 1
      %p267 = por %p265, %p266
      %p269 = scmp.ne.s32.totalorder %s254, %s268
      %p270 = scmp.eq.s32.totalorder %s36, 0
      %p271 = por %p269, %p270
      %s272 = ssub.s32 %s37, %s49
      %s273 = ssub.s32 %s38, %s45
      %s274 = sor.u32 %s272, %s273
      %p275 = scmp.eq.s32.totalorder %s274, 0
      %s277 = sadd.s32 %s276, 1
      %s278 = scalar_select %p275, %s276, %s277
      %p281 = pneg %p275
      %p282 = scmp.eq.s32.totalorder %s30, 1
      %p283 = por %p281, %p282
      %p284 = scmp.ne.s32.totalorder %s276, %s279
      %p285 = scmp.eq.s32.totalorder %s30, 0
      %p286 = por %p284, %p285
      %p287 = scmp.ne.s32.totalorder %s276, %s279
      %p288 = scmp.eq.s32.totalorder %s35, 1
      %p289 = por %p287, %p288
      %p290 = scmp.ne.s32.totalorder %s279, %s280
      %p291 = scmp.eq.s32.totalorder %s35, 0
      %p292 = por %p290, %p291
      %p293 = scmp.ne.s32.totalorder %s279, %s280
      %p294 = scmp.eq.s32.totalorder %s36, 1
      %p295 = por %p293, %p294
      %p297 = scmp.ne.s32.totalorder %s280, %s296
      %p298 = scmp.eq.s32.totalorder %s36, 0
      %p299 = por %p297, %p298
      %s300 = ssub.s32 %s37, %s49
      %s301 = ssub.s32 %s38, %s45
      %s302 = sor.u32 %s300, %s301
      %p303 = scmp.eq.s32.totalorder %s302, 0
      %s305 = sadd.s32 %s304, 1
      %s306 = scalar_select %p303, %s304, %s305
      %p309 = pneg %p303
      %p310 = scmp.eq.s32.totalorder %s30, 1
      %p311 = por %p309, %p310
      %p312 = scmp.ne.s32.totalorder %s304, %s307
      %p313 = scmp.eq.s32.totalorder %s30, 0
      %p314 = por %p312, %p313
      %p315 = scmp.ne.s32.totalorder %s304, %s307
      %p316 = scmp.eq.s32.totalorder %s35, 1
      %p317 = por %p315, %p316
      %p318 = scmp.ne.s32.totalorder %s307, %s308
      %p319 = scmp.eq.s32.totalorder %s35, 0
      %p320 = por %p318, %p319
      %p321 = scmp.ne.s32.totalorder %s307, %s308
      %p322 = scmp.eq.s32.totalorder %s36, 1
      %p323 = por %p321, %p322
      %p325 = scmp.ne.s32.totalorder %s308, %s324
      %p326 = scmp.eq.s32.totalorder %s36, 0
      %p327 = por %p325, %p326
      %p328 = scmp.le.s32.totalorder 1, %s30
      %p329 = scmp.lt.s32.totalorder %s30, 3
      %p330 = pnand %p328, %p329
      %p331 = pneg %p330
      // Predicated region
      $region9: #{tpu_custom_call.1} parent=5 // pred_check
        _
      $region10: #{tpu_custom_call.1} parent=5 // pred_check_branch
        %333 = sbr.rel (%p330) target = $region12
      $region11: #{tpu_custom_call.1} parent=5 // pred_region
        %s334 = ssub.s32 %s30, 1
        // Predicated region
        $region13: #{tpu_custom_call.1} parent=11 // pred_check
          %p335 = pneg %p117
        $region14: #{tpu_custom_call.1} parent=11 // pred_check_branch
          %337 = sbr.rel (%p335) target = $region16
        $region15: #{tpu_custom_call.1} parent=11 // pred_region
          %339 = vsyncadd [#allocation10], 0
          %s340 = sshll.u32 %s3, 4
          %s341 = int_to_ptr.hbm [resolvable:$true] %s340
          %s342 = sshll.u32 [#allocation11], 4
          %s343 = int_to_ptr.vmem [resolvable:$true] %s342
          %348 = dma.hbm_to_vmem [thread:$0]  %s341, 256, %s343, [#allocation10], 64, 64, 4
        $region16: #{tpu_custom_call.1} parent=11 // pred_fallthru
          _
        // Predicated region
        $region17: #{tpu_custom_call.1} parent=11 // pred_check
          %p349 = pneg %p138
        $region18: #{tpu_custom_call.1} parent=11 // pred_check_branch
          %351 = sbr.rel (%p349) target = $region20
        $region19: #{tpu_custom_call.1} parent=11 // pred_region
          _
        $region20: #{tpu_custom_call.1} parent=11 // pred_fallthru
          _
        // Predicated region
        $region21: #{tpu_custom_call.1} parent=11 // pred_check
          %p352 = pneg %p159
        $region22: #{tpu_custom_call.1} parent=11 // pred_check_branch
          %354 = sbr.rel (%p352) target = $region24
        $region23: #{tpu_custom_call.1} parent=11 // pred_region
          %356 = vsyncadd [#allocation13], 0
          %s357 = sshll.u32 %s5, 4
          %s358 = int_to_ptr.hbm [resolvable:$true] %s357
          %s359 = sshll.u32 [#allocation12], 4
          %s360 = int_to_ptr.vmem [resolvable:$true] %s359
          %365 = dma.hbm_to_vmem [thread:$0]  %s358, 256, %s360, [#allocation13], 64, 64, 4
        $region24: #{tpu_custom_call.1} parent=11 // pred_fallthru
          _
        // Predicated region
        $region25: #{tpu_custom_call.1} parent=11 // pred_check
          %p366 = pneg %p180
        $region26: #{tpu_custom_call.1} parent=11 // pred_check_branch
          %368 = sbr.rel (%p366) target = $region28
        $region27: #{tpu_custom_call.1} parent=11 // pred_region
          _
        $region28: #{tpu_custom_call.1} parent=11 // pred_fallthru
          _
        // Predicated region
        $region29: #{tpu_custom_call.1} parent=11 // pred_check
          %p369 = pneg %p201
        $region30: #{tpu_custom_call.1} parent=11 // pred_check_branch
          %371 = sbr.rel (%p369) target = $region32
        $region31: #{tpu_custom_call.1} parent=11 // pred_region
          _
        $region32: #{tpu_custom_call.1} parent=11 // pred_fallthru
          _
        // Predicated region
        $region33: #{tpu_custom_call.1} parent=11 // pred_check
          %p372 = pneg %p222
        $region34: #{tpu_custom_call.1} parent=11 // pred_check_branch
          %374 = sbr.rel (%p372) target = $region36
        $region35: #{tpu_custom_call.1} parent=11 // pred_region
          _
        $region36: #{tpu_custom_call.1} parent=11 // pred_fallthru
          _
        // Predicated region
        $region37: #{tpu_custom_call.1} parent=11 // pred_check
          %p375 = pneg %p243
        $region38: #{tpu_custom_call.1} parent=11 // pred_check_branch
          %377 = sbr.rel (%p375) target = $region40
        $region39: #{tpu_custom_call.1} parent=11 // pred_region
          %379 = vsyncadd [#allocation13], 0
          %s380 = sshll.u32 %s9, 4
          %s381 = int_to_ptr.hbm [resolvable:$true] %s380
          %s382 = sshll.u32 [#allocation14], 4
          %s383 = int_to_ptr.vmem [resolvable:$true] %s382
          %388 = dma.hbm_to_vmem [thread:$0]  %s381, 256, %s383, [#allocation13], 64, 64, 4
        $region40: #{tpu_custom_call.1} parent=11 // pred_fallthru
          _
        // Predicated region
        $region41: #{tpu_custom_call.1} parent=11 // pred_check
          %p389 = pneg %p264
        $region42: #{tpu_custom_call.1} parent=11 // pred_check_branch
          %391 = sbr.rel (%p389) target = $region44
        $region43: #{tpu_custom_call.1} parent=11 // pred_region
          _
        $region44: #{tpu_custom_call.1} parent=11 // pred_fallthru
          _
      $region12: #{tpu_custom_call.1} parent=5 // pred_fallthru
        _
      %p392 = scmp.lt.s32.totalorder %s30, 2
      // Predicated region
      $region45: #{tpu_custom_call.1} parent=5 // pred_check
        %p393 = pneg %p392
      $region46: #{tpu_custom_call.1} parent=5 // pred_check_branch
        %395 = sbr.rel (%p393) target = $region48
      $region47: #{tpu_custom_call.1} parent=5 // pred_region
        // Predicated region
        $region49: #{tpu_custom_call.1} parent=47 // pred_check
          %p396 = pneg %p64
        $region50: #{tpu_custom_call.1} parent=47 // pred_check_branch
          %398 = sbr.rel (%p396) target = $region52
        $region51: #{tpu_custom_call.1} parent=47 // pred_region
          %s399 = sand.u32 %s54, 1
          %s400 = scalar_lea.sflag [#allocation7], %s399
          %s401 = sand.u32 %s54, 1
          %s402 = smul.addr %s401, 4
          %s403 = scalar_lea.vmem [#allocation6], %s402
          %405 = vsyncadd %s400, 0
          %s406 = sadd.s32 %s38, %s37
          %s407 = smul.addr %s406, 4
          %s408 = scalar_lea.hbm %s1, %s407
          %s410 = sshll.u32 %s408, 4
          %s411 = int_to_ptr.hbm [resolvable:$true] %s410
          %s412 = sshll.u32 %s403, 4
          %s413 = int_to_ptr.vmem [resolvable:$true] %s412
          %415 = dma.hbm_to_vmem [thread:$0]  %s411, 64, %s413, %s400
        $region52: #{tpu_custom_call.1} parent=47 // pred_fallthru
          _
        // Predicated region
        $region53: #{tpu_custom_call.1} parent=47 // pred_check
          %p416 = pneg %p90
        $region54: #{tpu_custom_call.1} parent=47 // pred_check_branch
          %418 = sbr.rel (%p416) target = $region56
        $region55: #{tpu_custom_call.1} parent=47 // pred_region
          %s419 = sand.u32 %s30, 1
          %s420 = scalar_lea.sflag [#allocation10], %s419
          %s421 = sand.u32 %s80, 1
          %s422 = smul.addr %s421, 4
          %s423 = scalar_lea.vmem [#allocation9], %s422
          %425 = vsyncadd %s420, 0
          %s426 = smul.addr %s37, 4
          %s427 = scalar_lea.hbm %s2, %s426
          %s429 = sshll.u32 %s427, 4
          %s430 = int_to_ptr.hbm [resolvable:$true] %s429
          %s431 = sshll.u32 %s423, 4
          %s432 = int_to_ptr.vmem [resolvable:$true] %s431
          %434 = dma.hbm_to_vmem [thread:$0]  %s430, 64, %s432, %s420
        $region56: #{tpu_custom_call.1} parent=47 // pred_fallthru
          _
      $region48: #{tpu_custom_call.1} parent=5 // pred_fallthru
        _
      %p435 = scmp.le.s32.totalorder 1, %s30
      %p436 = scmp.lt.s32.totalorder %s30, 3
      %p437 = pnand %p435, %p436
      %p438 = pneg %p437
      // Predicated region
      $region57: #{tpu_custom_call.1} parent=5 // pred_check
        _
      $region58: #{tpu_custom_call.1} parent=5 // pred_check_branch
        %440 = sbr.rel (%p437) target = $region60
      $region59: #{tpu_custom_call.1} parent=5 // pred_region
        %s441 = ssub.s32 %s30, 1
        %s442 = sand.u32 %s57, 1
        %s443 = scalar_lea.sflag [#allocation7], %s442
        %s444 = sand.u32 %s57, 1
        %s445 = smul.addr %s444, 4
        %s446 = scalar_lea.vmem [#allocation6], %s445
        // Predicated region
        $region61: #{tpu_custom_call.1} parent=59 // pred_check
          %p447 = pneg %p70
        $region62: #{tpu_custom_call.1} parent=59 // pred_check_branch
          %449 = sbr.rel (%p447) target = $region64
        $region63: #{tpu_custom_call.1} parent=59 // pred_region
          %451 = dma.done %s443, 64
        $region64: #{tpu_custom_call.1} parent=59 // pred_fallthru
          _
        %s452 = sand.u32 %s35, 1
        %s453 = scalar_lea.sflag [#allocation10], %s452
        %s454 = sand.u32 %s83, 1
        %s455 = smul.addr %s454, 4
        %s456 = scalar_lea.vmem [#allocation9], %s455
        // Predicated region
        $region65: #{tpu_custom_call.1} parent=59 // pred_check
          %p457 = pneg %p96
        $region66: #{tpu_custom_call.1} parent=59 // pred_check_branch
          %459 = sbr.rel (%p457) target = $region68
        $region67: #{tpu_custom_call.1} parent=59 // pred_region
          %461 = dma.done %s453, 64
        $region68: #{tpu_custom_call.1} parent=59 // pred_fallthru
          _
        // Predicated region
        $region69: #{tpu_custom_call.1} parent=59 // pred_check
          %p462 = pneg %p117
        $region70: #{tpu_custom_call.1} parent=59 // pred_check_branch
          %464 = sbr.rel (%p462) target = $region72
        $region71: #{tpu_custom_call.1} parent=59 // pred_region
          %466 = dma.done [#allocation10], 256
        $region72: #{tpu_custom_call.1} parent=59 // pred_fallthru
          _
        // Predicated region
        $region73: #{tpu_custom_call.1} parent=59 // pred_check
          %p467 = pneg %p159
        $region74: #{tpu_custom_call.1} parent=59 // pred_check_branch
          %469 = sbr.rel (%p467) target = $region76
        $region75: #{tpu_custom_call.1} parent=59 // pred_region
          %471 = dma.done [#allocation13], 256
        $region76: #{tpu_custom_call.1} parent=59 // pred_fallthru
          _
        // Predicated region
        $region77: #{tpu_custom_call.1} parent=59 // pred_check
          %p472 = pneg %p243
        $region78: #{tpu_custom_call.1} parent=59 // pred_check_branch
          %474 = sbr.rel (%p472) target = $region80
        $region79: #{tpu_custom_call.1} parent=59 // pred_region
          %476 = dma.done [#allocation13], 256
        $region80: #{tpu_custom_call.1} parent=59 // pred_fallthru
          _
        %s477 = sand.u32 %s57, 1
        %s478 = scalar_lea.sflag [#allocation7], %s477
        %s479 = sand.u32 %s57, 1
        %s480 = smul.addr %s479, 4
        %s481 = scalar_lea.vmem [#allocation6], %s480
        %p482 = pneg %p70
        %p483 = pneg %p67
        %s484 = sand.u32 %s35, 1
        %s485 = scalar_lea.sflag [#allocation10], %s484
        %s486 = sand.u32 %s83, 1
        %s487 = smul.addr %s486, 4
        %s488 = scalar_lea.vmem [#allocation9], %s487
        %p489 = pneg %p96
        %p490 = pneg %p93
        %p491 = pneg %p117
        %p492 = pneg %p114
        %p493 = pneg %p138
        %p494 = pneg %p135
        %p495 = pneg %p159
        %p496 = pneg %p156
        %p497 = pneg %p180
        %p498 = pneg %p177
        %p499 = pneg %p201
        %p500 = pneg %p198
        %p501 = pneg %p222
        %p502 = pneg %p219
        %p503 = pneg %p243
        %p504 = pneg %p240
        %p505 = pneg %p264
        %p506 = pneg %p261
        %p507 = pneg %p292
        %p508 = pneg %p289
        %s509 = sand.u32 %s279, 1
        %s510 = scalar_lea.sflag [#allocation8], %s509
        %s511 = sand.u32 %s279, 1
        %s512 = smul.addr %s511, 8
        %s513 = scalar_lea.vmem [#allocation15], %s512
        %p514 = pneg %p320
        %p515 = pneg %p317
        %p516 = scmp.lt.s32.totalorder %s39, 1
        %s517 = scalar_select %p516, %s39, 1
        %p518 = scmp.lt.s32.totalorder %s40, 0
        %s519 = scalar_select %p518, %s40, 0
        %s520 = sadd.s32 %s519, %s517
        %s521 = smul.addr %s520, 8
        %s522 = scalar_lea.vmem %s12, %s521
        %p523 = scmp.lt.s32.totalorder %s39, 1
        %s524 = scalar_select %p523, %s39, 1
        %p525 = scmp.lt.s32.totalorder %s40, 0
        %s526 = scalar_select %p525, %s40, 0
        %s527 = sadd.s32 %s526, %s524
        %s528 = smul.addr %s527, 8
        %s529 = scalar_lea.vmem %s12, %s528
        %p531 = scmp.eq.s32.totalorder %s40, 0
        // Predicated region
        $region81: #{tpu_custom_call.1} parent=59 // pred_check
          %p532 = pneg %p531
        $region82: #{tpu_custom_call.1} parent=59 // pred_check_branch
          %534 = sbr.rel (%p532) target = $region84
        $region83: #{tpu_custom_call.1} parent=59 // pred_region
          %v535 = vld [vmem:[%s456] sm:$0xf]
          %v536 = vld [vmem:[#allocation12] sm:$0xf]
          %v537 = vld [vmem:[#allocation12 + $0x4] sm:$0xf]
          %v538 = vld [vmem:[#allocation12 + $0x8] sm:$0xf]
          %v539 = vld [vmem:[#allocation12 + $0xc] sm:$0xf]
          %v540 = vld [vmem:[%s6] sm:$0x1]
          %v542 = vperm.slane %v540, 0
          %v548 = vunpack.c.l.b16 %v536
          %v549 = vunpack.c.l.b16 %v537
          %v550 = vunpack.c.l.b16 %v538
          %v551 = vunpack.c.l.b16 %v539
          %v552 = vpack.c.b16 %v549, %v548
          %v553 = vpack.c.b16 %v551, %v550
          %vm556 = vcmask 261120
          %v558 = vsel %vm556, %v535, 0
          %560 = vmatpush.bf16.msra.mxu0 0
          %561 = vmatpush.bf16.msra.mxu0 0
          %562 = vmatpush.bf16.msra.mxu0 0
          %563 = vmatpush.bf16.msra.mxu0 0
          %564 = vmatpush.bf16.msra.mxu0 0
          %565 = vmatpush.bf16.msra.mxu0 0
          %566 = vmatpush.bf16.msra.mxu0 %v553
          %567 = vmatpush.bf16.msra.mxu0 %v552
          %568 = vmatmul.bf16.gmra.mxu0 %v558
          %v569 = vpop.f32.mrf.mxu0
          %v570 = vadd.f32 %v542, %v569
          %v571 = vpop.f32.mrf.mxu0
          %572 = vdwg.mxu0
          %v573 = vpack.c.bf16 %v570, %v570
          %vm574 = vcmask 257024
          %575 = vst.msk [vmem:[#allocation2] sm:$0xf] %vm574, %v573
        $region84: #{tpu_custom_call.1} parent=59 // pred_fallthru
          _
        %v576 = vld [vmem:[%s446] sm:$0xf]
        %v577 = vld [vmem:[#allocation11] sm:$0xf]
        %v578 = vld [vmem:[#allocation11 + $0x4] sm:$0xf]
        %v579 = vld [vmem:[#allocation11 + $0x8] sm:$0xf]
        %v580 = vld [vmem:[#allocation11 + $0xc] sm:$0xf]
        %v581 = vld [vmem:[%s4] sm:$0x1]
        %v583 = vperm.slane %v581, 0
        %v589 = vunpack.c.l.b16 %v577
        %v590 = vunpack.c.l.b16 %v578
        %v591 = vunpack.c.l.b16 %v579
        %v592 = vunpack.c.l.b16 %v580
        %v593 = vpack.c.b16 %v590, %v589
        %v594 = vpack.c.b16 %v592, %v591
        %vm597 = vcmask 261120
        %v599 = vsel %vm597, %v576, 0
        %601 = vmatpush.bf16.msra.mxu0 0
        %602 = vmatpush.bf16.msra.mxu0 0
        %603 = vmatpush.bf16.msra.mxu0 0
        %604 = vmatpush.bf16.msra.mxu0 0
        %605 = vmatpush.bf16.msra.mxu0 0
        %606 = vmatpush.bf16.msra.mxu0 0
        %607 = vmatpush.bf16.msra.mxu0 %v594
        %608 = vmatpush.bf16.msra.mxu0 %v593
        %609 = vmatmul.bf16.gmra.mxu0 %v599
        %v610 = vpop.f32.mrf.mxu0
        %v611 = vadd.f32 %v583, %v610
        %v612 = vpop.f32.mrf.mxu0
        %613 = vdwg.mxu0
        %v614 = vpack.c.bf16 %v611, %v611
        %v615 = vlaneseq
        %v616 = vand.u32 %v615, 127
        %v617 = vld [vmem:[%s7] sm:$0xf]
        %v618 = vld [vmem:[%s8] sm:$0x1]
        %v620 = vperm.slane %v618, 0
        %vm622 = vcmask 64512
        %v624 = vsel %vm622, %v614, 0
        %vm626 = vcmask 1043456
        %v628 = vsel %vm626, %v617, 0
        %630 = vmatpush.bf16.msra.mxu0 0
        %631 = vmatpush.bf16.msra.mxu0 0
        %632 = vmatpush.bf16.msra.mxu0 0
        %633 = vmatpush.bf16.msra.mxu0 0
        %634 = vmatpush.bf16.msra.mxu0 0
        %635 = vmatpush.bf16.msra.mxu0 0
        %636 = vmatpush.bf16.msra.mxu0 0
        %637 = vmatpush.bf16.msra.mxu0 %v628
        %638 = vmatmul.bf16.gmra.mxu0 %v624
        %v639 = vpop.f32.mrf.mxu0
        %v640 = vadd.f32 %v620, %v639
        %v641 = vpop.f32.mrf.mxu0
        %642 = vdwg.mxu0
        %v643 = vsel %vm622, %v640, -inf
        %644 = vmax.xlane.f32.xlu0 %v643
        %v645 = vpop.xlane.xlu0 %644
        %vm646 = vcmp.eq.f32.partialorder %v640, %v645
        %v647 = vsel %vm646, %v616, 8
        %v648 = vsel %vm622, %v647, 2147483647
        %v649 = vand.u32 %v648, 65535
        %v650 = vshra.s32 %v648, 16
        %v651 = vcvt.s32.f32 %v649
        %v652 = vcvt.s32.f32 %v650
        %653 = vmin.xlane.f32.xlu0 %v652
        %v654 = vpop.xlane.xlu0 %653
        %vm655 = vcmp.eq.f32.partialorder %v652, %v654
        %v656 = vsel %vm655, %v651, inf
        %657 = vmin.xlane.f32.xlu0 %v656
        %v658 = vpop.xlane.xlu0 %657
        %v659 = vcvt.f32.s32 %v658
        %v660 = vcvt.f32.s32 %v654
        %v661 = vshll.u32 %v660, 16
        %v662 = vadd.s32 %v661, %v659
        %vm663 = vcmask 7168
        %664 = vst.msk [vmem:[%s529] sm:$0xff] %vm663, %v662
        %vm665 = vcmp.eq.s32.totalorder %v616, %v662
        %v666 = vsel %vm665, 1, 0
        %v667 = vcvt.s32.f32 %v666
        %v668 = vpack.c.bf16 %v667, %v667
        %v669 = vld [vmem:[#allocation2] sm:$0xf]
        %v671 = vsel %vm622, %v668, 0
        %v674 = vsel %vm626, %v669, 0
        %676 = vmatpush.bf16.msra.mxu0 0
        %677 = vmatpush.bf16.msra.mxu0 0
        %678 = vmatpush.bf16.msra.mxu0 0
        %679 = vmatpush.bf16.msra.mxu0 0
        %680 = vmatpush.bf16.msra.mxu0 0
        %681 = vmatpush.bf16.msra.mxu0 0
        %682 = vmatpush.bf16.msra.mxu0 0
        %683 = vmatpush.bf16.msra.mxu0 %v674
        %684 = vmatmul.bf16.gmra.mxu0 %v671
        %v685 = vpop.f32.mrf.mxu0
        %v686 = vadd.f32 0.0, %v685
        %v687 = vpop.f32.mrf.mxu0
        %688 = vdwg.mxu0
        %689 = vst.msk [vmem:[#allocation3] sm:$0xff] %vm622, %v686
        %v690 = vld [vmem:[%s7] sm:$0xf]
        %v691 = vld [vmem:[%s8] sm:$0x1]
        %v693 = vperm.slane %v691, 0
        %v696 = vunpack.c.l.b16 %v614
        %v697 = vpack.c.b16 %v696, %v696
        %698 = vrot.lane.b32.xlu0 %v697, 120
        %v699 = vpop.permute.xlu0 %698
        %v701 = vsel %vm622, %v699, 0
        %v704 = vsel %vm626, %v690, 0
        %706 = vmatpush.bf16.msra.mxu0 0
        %707 = vmatpush.bf16.msra.mxu0 0
        %708 = vmatpush.bf16.msra.mxu0 0
        %709 = vmatpush.bf16.msra.mxu0 0
        %710 = vmatpush.bf16.msra.mxu0 0
        %711 = vmatpush.bf16.msra.mxu0 0
        %712 = vmatpush.bf16.msra.mxu0 0
        %713 = vmatpush.bf16.msra.mxu0 %v704
        %714 = vmatmul.bf16.gmra.mxu0 %v701
        %v715 = vpop.f32.mrf.mxu0
        %v716 = vadd.f32 %v693, %v715
        %v717 = vpop.f32.mrf.mxu0
        %718 = vdwg.mxu0
        %v719 = vsel %vm622, %v716, -inf
        %720 = vmax.xlane.f32.xlu0 %v719
        %v721 = vpop.xlane.xlu0 %720
        %vm722 = vcmp.eq.f32.partialorder %v716, %v721
        %v723 = vsel %vm722, %v616, 8
        %v724 = vsel %vm622, %v723, 2147483647
        %v725 = vand.u32 %v724, 65535
        %v726 = vshra.s32 %v724, 16
        %v727 = vcvt.s32.f32 %v725
        %v728 = vcvt.s32.f32 %v726
        %729 = vmin.xlane.f32.xlu0 %v728
        %v730 = vpop.xlane.xlu0 %729
        %vm731 = vcmp.eq.f32.partialorder %v728, %v730
        %v732 = vsel %vm731, %v727, inf
        %733 = vmin.xlane.f32.xlu0 %v732
        %v734 = vpop.xlane.xlu0 %733
        %v735 = vcvt.f32.s32 %v734
        %v736 = vcvt.f32.s32 %v730
        %v737 = vshll.u32 %v736, 16
        %v738 = vadd.s32 %v737, %v735
        %vm739 = vcmask 15368
        %740 = vst.msk [vmem:[%s529] sm:$0xff] %vm739, %v738
        %vm741 = vcmp.eq.s32.totalorder %v616, %v738
        %v742 = vsel %vm741, 1, 0
        %v743 = vcvt.s32.f32 %v742
        %v744 = vpack.c.bf16 %v743, %v743
        %v745 = vld [vmem:[#allocation2] sm:$0xf]
        %v747 = vunpack.c.l.b16 %v745
        %v748 = vpack.c.b16 %v747, %v747
        %749 = vrot.lane.b32.xlu0 %v748, 120
        %v750 = vpop.permute.xlu0 %749
        %v752 = vsel %vm622, %v744, 0
        %v755 = vsel %vm626, %v750, 0
        %757 = vmatpush.bf16.msra.mxu0 0
        %758 = vmatpush.bf16.msra.mxu0 0
        %759 = vmatpush.bf16.msra.mxu0 0
        %760 = vmatpush.bf16.msra.mxu0 0
        %761 = vmatpush.bf16.msra.mxu0 0
        %762 = vmatpush.bf16.msra.mxu0 0
        %763 = vmatpush.bf16.msra.mxu0 0
        %764 = vmatpush.bf16.msra.mxu0 %v755
        %765 = vmatmul.bf16.gmra.mxu0 %v752
        %v766 = vpop.f32.mrf.mxu0
        %v767 = vadd.f32 0.0, %v766
        %v768 = vpop.f32.mrf.mxu0
        %769 = vdwg.mxu0
        %771 = vrot.lane.b32.xlu0 %v767, 8
        %v772 = vpop.permute.xlu0 %771
        %vm774 = vcmask 130112
        %775 = vst.msk [vmem:[#allocation3] sm:$0xff] %vm774, %v772
        %v776 = vld [vmem:[%s7] sm:$0xf]
        %v777 = vld [vmem:[%s8] sm:$0x1]
        %v779 = vperm.slane %v777, 0
        %781 = vrot.lane.b32.xlu0 %v697, 112
        %v782 = vpop.permute.xlu0 %781
        %v784 = vsel %vm622, %v782, 0
        %v787 = vsel %vm626, %v776, 0
        %789 = vmatpush.bf16.msra.mxu0 0
        %790 = vmatpush.bf16.msra.mxu0 0
        %791 = vmatpush.bf16.msra.mxu0 0
        %792 = vmatpush.bf16.msra.mxu0 0
        %793 = vmatpush.bf16.msra.mxu0 0
        %794 = vmatpush.bf16.msra.mxu0 0
        %795 = vmatpush.bf16.msra.mxu0 0
        %796 = vmatpush.bf16.msra.mxu0 %v787
        %797 = vmatmul.bf16.gmra.mxu0 %v784
        %v798 = vpop.f32.mrf.mxu0
        %v799 = vadd.f32 %v779, %v798
        %v800 = vpop.f32.mrf.mxu0
        %801 = vdwg.mxu0
        %v802 = vsel %vm622, %v799, -inf
        %803 = vmax.xlane.f32.xlu0 %v802
        %v804 = vpop.xlane.xlu0 %803
        %vm805 = vcmp.eq.f32.partialorder %v799, %v804
        %v806 = vsel %vm805, %v616, 8
        %v807 = vsel %vm622, %v806, 2147483647
        %v808 = vand.u32 %v807, 65535
        %v809 = vshra.s32 %v807, 16
        %v810 = vcvt.s32.f32 %v808
        %v811 = vcvt.s32.f32 %v809
        %812 = vmin.xlane.f32.xlu0 %v811
        %v813 = vpop.xlane.xlu0 %812
        %vm814 = vcmp.eq.f32.partialorder %v811, %v813
        %v815 = vsel %vm814, %v810, inf
        %816 = vmin.xlane.f32.xlu0 %v815
        %v817 = vpop.xlane.xlu0 %816
        %v818 = vcvt.f32.s32 %v817
        %v819 = vcvt.f32.s32 %v813
        %v820 = vshll.u32 %v819, 16
        %v821 = vadd.s32 %v820, %v818
        %vm822 = vcmask 23568
        %823 = vst.msk [vmem:[%s529] sm:$0xff] %vm822, %v821
        %vm824 = vcmp.eq.s32.totalorder %v616, %v821
        %v825 = vsel %vm824, 1, 0
        %v826 = vcvt.s32.f32 %v825
        %v827 = vpack.c.bf16 %v826, %v826
        %v828 = vld [vmem:[#allocation2] sm:$0xf]
        %v830 = vunpack.c.l.b16 %v828
        %v831 = vpack.c.b16 %v830, %v830
        %832 = vrot.lane.b32.xlu0 %v831, 112
        %v833 = vpop.permute.xlu0 %832
        %v835 = vsel %vm622, %v827, 0
        %v838 = vsel %vm626, %v833, 0
        %840 = vmatpush.bf16.msra.mxu0 0
        %841 = vmatpush.bf16.msra.mxu0 0
        %842 = vmatpush.bf16.msra.mxu0 0
        %843 = vmatpush.bf16.msra.mxu0 0
        %844 = vmatpush.bf16.msra.mxu0 0
        %845 = vmatpush.bf16.msra.mxu0 0
        %846 = vmatpush.bf16.msra.mxu0 0
        %847 = vmatpush.bf16.msra.mxu0 %v838
        %848 = vmatmul.bf16.gmra.mxu0 %v835
        %v849 = vpop.f32.mrf.mxu0
        %v850 = vadd.f32 0.0, %v849
        %v851 = vpop.f32.mrf.mxu0
        %852 = vdwg.mxu0
        %854 = vrot.lane.b32.xlu0 %v850, 16
        %v855 = vpop.permute.xlu0 %854
        %vm857 = vcmask 195712
        %858 = vst.msk [vmem:[#allocation3] sm:$0xff] %vm857, %v855
        %v859 = vld [vmem:[%s7] sm:$0xf]
        %v860 = vld [vmem:[%s8] sm:$0x1]
        %v862 = vperm.slane %v860, 0
        %864 = vrot.lane.b32.xlu0 %v697, 104
        %v865 = vpop.permute.xlu0 %864
        %v867 = vsel %vm622, %v865, 0
        %v870 = vsel %vm626, %v859, 0
        %872 = vmatpush.bf16.msra.mxu0 0
        %873 = vmatpush.bf16.msra.mxu0 0
        %874 = vmatpush.bf16.msra.mxu0 0
        %875 = vmatpush.bf16.msra.mxu0 0
        %876 = vmatpush.bf16.msra.mxu0 0
        %877 = vmatpush.bf16.msra.mxu0 0
        %878 = vmatpush.bf16.msra.mxu0 0
        %879 = vmatpush.bf16.msra.mxu0 %v870
        %880 = vmatmul.bf16.gmra.mxu0 %v867
        %v881 = vpop.f32.mrf.mxu0
        %v882 = vadd.f32 %v862, %v881
        %v883 = vpop.f32.mrf.mxu0
        %884 = vdwg.mxu0
        %v885 = vsel %vm622, %v882, -inf
        %886 = vmax.xlane.f32.xlu0 %v885
        %v887 = vpop.xlane.xlu0 %886
        %vm888 = vcmp.eq.f32.partialorder %v882, %v887
        %v889 = vsel %vm888, %v616, 8
        %v890 = vsel %vm622, %v889, 2147483647
        %v891 = vand.u32 %v890, 65535
        %v892 = vshra.s32 %v890, 16
        %v893 = vcvt.s32.f32 %v891
        %v894 = vcvt.s32.f32 %v892
        %895 = vmin.xlane.f32.xlu0 %v894
        %v896 = vpop.xlane.xlu0 %895
        %vm897 = vcmp.eq.f32.partialorder %v894, %v896
        %v898 = vsel %vm897, %v893, inf
        %899 = vmin.xlane.f32.xlu0 %v898
        %v900 = vpop.xlane.xlu0 %899
        %v901 = vcvt.f32.s32 %v900
        %v902 = vcvt.f32.s32 %v896
        %v903 = vshll.u32 %v902, 16
        %v904 = vadd.s32 %v903, %v901
        %vm905 = vcmask 31768
        %906 = vst.msk [vmem:[%s529] sm:$0xff] %vm905, %v904
        %vm907 = vcmp.eq.s32.totalorder %v616, %v904
        %v908 = vsel %vm907, 1, 0
        %v909 = vcvt.s32.f32 %v908
        %v910 = vpack.c.bf16 %v909, %v909
        %v911 = vld [vmem:[#allocation2] sm:$0xf]
        %v913 = vunpack.c.l.b16 %v911
        %v914 = vpack.c.b16 %v913, %v913
        %915 = vrot.lane.b32.xlu0 %v914, 104
        %v916 = vpop.permute.xlu0 %915
        %v918 = vsel %vm622, %v910, 0
        %v921 = vsel %vm626, %v916, 0
        %923 = vmatpush.bf16.msra.mxu0 0
        %924 = vmatpush.bf16.msra.mxu0 0
        %925 = vmatpush.bf16.msra.mxu0 0
        %926 = vmatpush.bf16.msra.mxu0 0
        %927 = vmatpush.bf16.msra.mxu0 0
        %928 = vmatpush.bf16.msra.mxu0 0
        %929 = vmatpush.bf16.msra.mxu0 0
        %930 = vmatpush.bf16.msra.mxu0 %v921
        %931 = vmatmul.bf16.gmra.mxu0 %v918
        %v932 = vpop.f32.mrf.mxu0
        %v933 = vadd.f32 0.0, %v932
        %v934 = vpop.f32.mrf.mxu0
        %935 = vdwg.mxu0
        %937 = vrot.lane.b32.xlu0 %v933, 24
        %v938 = vpop.permute.xlu0 %937
        %vm940 = vcmask 261312
        %941 = vst.msk [vmem:[#allocation3] sm:$0xff] %vm940, %v938
        %v942 = vld [vmem:[#allocation3] sm:$0xff]
        %v943 = vpack.c.bf16 %v942, %v942
        %v944 = vld [vmem:[#allocation14] sm:$0xf]
        %v945 = vld [vmem:[#allocation14 + $0x4] sm:$0xf]
        %v946 = vld [vmem:[#allocation14 + $0x8] sm:$0xf]
        %v947 = vld [vmem:[#allocation14 + $0xc] sm:$0xf]
        %v948 = vld [vmem:[%s10] sm:$0x1]
        %v950 = vperm.slane %v948, 0
        %v956 = vunpack.c.l.b16 %v944
        %v957 = vunpack.c.l.b16 %v945
        %v958 = vunpack.c.l.b16 %v946
        %v959 = vunpack.c.l.b16 %v947
        %v960 = vpack.c.b16 %v957, %v956
        %v961 = vpack.c.b16 %v959, %v958
        %v965 = vsel %vm597, %v943, 0
        %967 = vmatpush.bf16.msra.mxu0 0
        %968 = vmatpush.bf16.msra.mxu0 0
        %969 = vmatpush.bf16.msra.mxu0 0
        %970 = vmatpush.bf16.msra.mxu0 0
        %971 = vmatpush.bf16.msra.mxu0 0
        %972 = vmatpush.bf16.msra.mxu0 0
        %973 = vmatpush.bf16.msra.mxu0 %v961
        %974 = vmatpush.bf16.msra.mxu0 %v960
        %975 = vmatmul.bf16.gmra.mxu0 %v965
        %v976 = vpop.f32.mrf.mxu0
        %v977 = vadd.f32 %v950, %v976
        %v978 = vpop.f32.mrf.mxu0
        %979 = vdwg.mxu0
        %980 = vst.msk [vmem:[%s513] sm:$0xff] %vm597, %v977
        %s981 = sand.u32 %s279, 1
        %s982 = scalar_lea.sflag [#allocation8], %s981
        %s983 = sand.u32 %s279, 1
        %s984 = smul.addr %s983, 8
        %s985 = scalar_lea.vmem [#allocation15], %s984
        %p986 = scmp.lt.s32.totalorder %s39, 1
        %s987 = scalar_select %p986, %s39, 1
        %p988 = scmp.lt.s32.totalorder %s40, 0
        %s989 = scalar_select %p988, %s40, 0
        %s990 = sadd.s32 %s989, %s987
        %s991 = smul.addr %s990, 8
        %s992 = scalar_lea.vmem %s12, %s991
        // Predicated region
        $region85: #{tpu_custom_call.1} parent=59 // pred_check
          %p993 = pneg %p289
        $region86: #{tpu_custom_call.1} parent=59 // pred_check_branch
          %995 = sbr.rel (%p993) target = $region88
        $region87: #{tpu_custom_call.1} parent=59 // pred_region
          %997 = vsyncadd %s982, 0
          %s998 = sadd.s32 %s40, %s39
          %s999 = smul.addr %s998, 8
          %s1000 = scalar_lea.hbm %s11, %s999
          %s1002 = sshll.u32 %s985, 4
          %s1003 = int_to_ptr.vmem [resolvable:$true] %s1002
          %s1004 = sshll.u32 %s1000, 4
          %s1005 = int_to_ptr.hbm [resolvable:$true] %s1004
          %1007 = dma.vmem_to_hbm [thread:$0]  %s1003, 128, %s1005, %s982
        $region88: #{tpu_custom_call.1} parent=59 // pred_fallthru
          _
        // Predicated region
        $region89: #{tpu_custom_call.1} parent=59 // pred_check
          %p1008 = pneg %p317
        $region90: #{tpu_custom_call.1} parent=59 // pred_check_branch
          %1010 = sbr.rel (%p1008) target = $region92
        $region91: #{tpu_custom_call.1} parent=59 // pred_region
          _
        $region92: #{tpu_custom_call.1} parent=59 // pred_fallthru
          _
      $region60: #{tpu_custom_call.1} parent=5 // pred_fallthru
        _
      %p1011 = scmp.le.s32.totalorder 2, %s30
      // Predicated region
      $region93: #{tpu_custom_call.1} parent=5 // pred_check
        %p1012 = pneg %p1011
      $region94: #{tpu_custom_call.1} parent=5 // pred_check_branch
        %1014 = sbr.rel (%p1012) target = $region96
      $region95: #{tpu_custom_call.1} parent=5 // pred_region
        %s1015 = ssub.s32 %s30, 2
        // Predicated region
        $region97: #{tpu_custom_call.1} parent=95 // pred_check
          %p1016 = pneg %p295
        $region98: #{tpu_custom_call.1} parent=95 // pred_check_branch
          %1018 = sbr.rel (%p1016) target = $region100
        $region99: #{tpu_custom_call.1} parent=95 // pred_region
          %s1019 = sand.u32 %s280, 1
          %s1020 = scalar_lea.sflag [#allocation8], %s1019
          %s1021 = sand.u32 %s280, 1
          %s1022 = smul.addr %s1021, 8
          %s1023 = scalar_lea.vmem [#allocation15], %s1022
          %1025 = dma.done %s1020, 128
        $region100: #{tpu_custom_call.1} parent=95 // pred_fallthru
          _
        // Predicated region
        $region101: #{tpu_custom_call.1} parent=95 // pred_check
          %p1026 = pneg %p323
        $region102: #{tpu_custom_call.1} parent=95 // pred_check_branch
          %1028 = sbr.rel (%p1026) target = $region104
        $region103: #{tpu_custom_call.1} parent=95 // pred_region
          %p1029 = scmp.lt.s32.totalorder %s41, 1
          %s1030 = scalar_select %p1029, %s41, 1
          %p1031 = scmp.lt.s32.totalorder %s42, 0
          %s1032 = scalar_select %p1031, %s42, 0
          %s1033 = sadd.s32 %s1032, %s1030
          %s1034 = smul.addr %s1033, 8
          %s1035 = scalar_lea.vmem %s12, %s1034
        $region104: #{tpu_custom_call.1} parent=95 // pred_fallthru
          _
      $region96: #{tpu_custom_call.1} parent=5 // pred_fallthru
        _
    $region6: #{tpu_custom_call.1} parent=1 // loop_footer
      %s34 = sadd.s32 1, %s30
    $region7: #{tpu_custom_call.1} parent=1 // loop_footer_branch
      %29 = sbr.rel target = $region3
    $region8: #{tpu_custom_call.1} parent=1 // loop_exit
      _
    %1036 = vsyncpa [#allocation7], 1
    %s1037 = scalar_lea.sflag [#allocation7], 1
    %1038 = vsyncpa %s1037, 1
    %1039 = vsyncpa [#allocation10], 1
    %s1040 = scalar_lea.sflag [#allocation10], 1
    %1041 = vsyncpa %s1040, 1
    %1042 = vsyncpa [#allocation13], 1
    %1043 = vsyncpa [#allocation8], 1
    %s1044 = scalar_lea.sflag [#allocation8], 1
    %1045 = vsyncpa %s1044, 1

</llo_original>
